<compile_context>
chip_gen: v7x
topology: tpu7x:2x2x1
jax: 0.10.0
libtpu: 0.0.40
codegen_flags: <defaults>
</compile_context>

<pallas_src>
import jax
import jax.numpy as jnp
from jax import lax
from jax.experimental import pallas as pl
from jax.experimental.pallas import tpu as pltpu


def _make_dwconv_kernel(TH, CH, Wo, C, Cout, ksize):
    """Fused depthwise(kxk) + BN + SiLU + pointwise(1x1) + BN + SiLU kernel body."""
    n_chunks = TH // CH
    CM = CH * Wo  # output elements produced per chunk (lane-dense when CM % 128 == 0)

    def kernel(x_ref, wd_ref, b1_ref, wp_ref, b2_ref, o_ref):
        # x_ref : [1, Hp, Wp, C]    bf16 padded NHWC image (resident across H-tiles)
        # wd_ref: [k*k, C]          bf16 depthwise weights with BN1 scale folded in
        # b1_ref: [1, C]            f32  BN1 folded bias
        # wp_ref: [Cout, C]         bf16 pointwise weights with BN2 scale folded in
        # b2_ref: [Cout, 1]         f32  BN2 folded bias
        # o_ref : [1, Cout, TH*Wo]  f32  lane-dense output tile (NC(HW) layout)
        j = pl.program_id(1)
        row0 = pl.multiple_of(j * TH, TH)          # first output row of this H-tile

        wd = wd_ref[...].astype(jnp.float32)       # [k*k, C] (tiny, one cast per step)
        wtaps = [wd[t].reshape(1, 1, C) for t in range(ksize * ksize)]   # hoisted taps
        b1 = b1_ref[...].reshape(1, 1, C)
        wp = wp_ref[...]                           # bf16 [Cout, C]
        b2 = b2_ref[...]                           # f32  [Cout, 1]

        # Statically unrolled chunk loop: every slice offset below is compile-time static
        # except the H-row base (row offsets need no sublane alignment). Each iteration is
        # self-contained (load -> accumulate -> matmul -> store), so live ranges stay short.
        for r in range(n_chunks):
            acc = None
            for kh in range(ksize):
                # one aligned full-width load per (chunk, kh): [CH, Wp, C], W starts at 0
                xwin = x_ref[0, pl.ds(row0 + r * CH + kh, CH), :, :].astype(jnp.float32)
                for kw in range(ksize):
                    xs = xwin[:, kw:kw + Wo, :]    # in-register sublane shift (XLU), not a ref slice
                    prod = xs * wtaps[kh * ksize + kw]
                    acc = prod if acc is None else acc + prod   # init with first tap
            z = acc + b1                           # folded BN1 bias
            z = z * jax.nn.sigmoid(z)              # SiLU (EUP)

            # 1x1 conv on the MXU: y[Cout, CM] = wp[Cout, C] . z[CM, C]^T
            # lane-dim contraction on both operands -> only the small wp is re-laid out;
            # the large activation chunk is never transposed.
            # NOTE: z.reshape is a pure relabel when Wo % 8 == 0 (true for typical widths).
            z2 = z.reshape(CM, C).astype(jnp.bfloat16)
            y = lax.dot_general(wp, z2, (((1,), (1,)), ((), ())),
                                preferred_element_type=jnp.float32)     # [Cout, CM]
            y = y + b2                             # folded BN2 bias
            y = y * jax.nn.sigmoid(y)              # SiLU
            o_ref[0, :, pl.ds(r * CM, CM)] = y.astype(o_ref.dtype)      # lane-dense store

    return kernel


def _vmem_budget_bytes():
    """Generation-aware VMEM budget (75% of physical if detectable, conservative otherwise)."""
    try:
        info = pltpu.get_tpu_info()
        cap = int(getattr(info, "vmem_capacity_bytes", 0))
        if cap > 0:
            return cap * 3 // 4
    except Exception:
        pass
    return 48 << 20        # conservative fallback: fits v7x's 64 MiB physical VMEM


def _pick_tiles(N, Ho, Wo, Hp, Wp, C, Cout, ksize, tile_m, chunk_rows, budget):
    """Pick H-tile (TH) and register-chunk (CH) sizes under the VMEM / lane-density rules."""
    in_resident = Hp * Wp * C * 2                          # bf16 image block (per buffer)
    wgt = (ksize * ksize * C + Cout * C) * 2 + (C + Cout) * 4

    def need(th):
        # 2 buffers for the (resident) image over the batch axis + 2 output buffers + weights.
        return 2 * in_resident + 2 * (Cout * th * Wo * 4) + 2 * wgt + (2 << 20)

    cands = [d for d in range(1, Ho + 1)
             if Ho % d == 0 and (d * Wo) % 128 == 0
             and d * Wo <= tile_m and need(d) <= budget]
    if cands:
        if N >= 2:
            TH = max(cands)
        else:
            # N == 1: make sure both TensorCores get tiles (prefer an even number of tiles).
            multi = [d for d in cands if Ho // d >= 2]
            even = [d for d in multi if (Ho // d) % 2 == 0]
            TH = max(even) if even else (max(multi) if multi else max(cands))
    else:
        # Fallback: whole image as one tile (full-dim block is always legal). If
        # (Ho*Wo) % 128 != 0 this produces masked stores -- a perf hazard, not a bug.
        TH = Ho
    n_h = Ho // TH

    if chunk_rows is not None:
        CH = int(chunk_rows)
        assert TH % CH == 0, f"chunk_rows={CH} must divide the H-tile TH={TH}"
    else:
        # Largest chunk whose f32 accumulator fits a register-friendly budget while keeping
        # the per-chunk output width a multiple of 128 (unmasked stores).
        reg_budget = 64 * 1024
        divs = [c for c in range(1, TH + 1) if TH % c == 0 and (c * Wo) % 128 == 0]
        fit = [c for c in divs if c * Wo * C * 4 <= reg_budget]
        CH = max(fit) if fit else (min(divs) if divs else TH)
    return TH, n_h, CH, need(TH)


def dwconv_forward(x,
                   dw_weight, bn1_gamma, bn1_beta, bn1_mean, bn1_var,
                   pw_weight, bn2_gamma, bn2_beta, bn2_mean, bn2_var,
                   *, stride=1, eps=1e-3, tile_m=2048, chunk_rows=None):
    """DWConv forward. x: [N, C, H, W] float32 (NCHW). Returns [N, Cout, H, W] float32."""
    N, C, H, W = x.shape
    Cout = pw_weight.shape[0]
    ksize = dw_weight.shape[-1]
    assert dw_weight.shape == (C, 1, ksize, ksize)
    assert pw_weight.shape == (Cout, C, 1, 1)
    assert ksize % 2 == 1, "only odd ksize ('same' padding) implemented"
    # TODO(synk): stride > 1 depthwise path not implemented (DWConv default is stride=1).
    assert stride == 1, "only stride=1 implemented"

    p = (ksize - 1) // 2
    Ho, Wo = H, W
    Hp, Wp = H + 2 * p, W + 2 * p

    # host glue: NCHW -> padded NHWC, cast to bf16 (halves HBM/VMEM traffic for the image)
    x_pad = jnp.pad(jnp.transpose(x, (0, 2, 3, 1)),
                    ((0, 0), (p, p), (p, p), (0, 0))).astype(jnp.bfloat16)

    # fold BatchNorm (eval-mode running stats) into the conv weights / biases (f32 math)
    s1 = bn1_gamma / jnp.sqrt(bn1_var + eps)
    wd = dw_weight[:, 0, :, :] * s1[:, None, None]                      # [C, k, k]
    wd = jnp.transpose(wd, (1, 2, 0)).reshape(ksize * ksize, C).astype(jnp.bfloat16)
    b1 = (bn1_beta - bn1_mean * s1).reshape(1, C).astype(jnp.float32)

    s2 = bn2_gamma / jnp.sqrt(bn2_var + eps)
    wp = (pw_weight[:, :, 0, 0] * s2[:, None]).astype(jnp.bfloat16)     # [Cout, C]
    b2 = (bn2_beta - bn2_mean * s2).reshape(Cout, 1).astype(jnp.float32)

    budget = _vmem_budget_bytes()
    TH, n_h, CH, vmem_need = _pick_tiles(N, Ho, Wo, Hp, Wp, C, Cout, ksize,
                                         tile_m, chunk_rows, budget)
    # TODO(synk): very large v7x layers should replace full-image residency with
    # (TH + k - 1)-row halo DMA tiling; the budget check + vmem_limit below keeps
    # darknet-scale layers within scoped VMEM on all generations.
    vmem_limit = None if vmem_need <= (16 << 20) else int(min(budget, vmem_need + (8 << 20)))

    kernel = _make_dwconv_kernel(TH, CH, Wo, C, Cout, ksize)

    flops = 2 * N * Ho * Wo * (ksize * ksize * C + C * Cout)
    transcendentals = N * Ho * Wo * (C + Cout)
    bytes_accessed = (2 * N * Hp * Wp * C + 4 * N * Cout * Ho * Wo
                      + 2 * (ksize * ksize * C + Cout * C) + 4 * (C + Cout))

    out_flat = pl.pallas_call(
        kernel,
        out_shape=jax.ShapeDtypeStruct((N, Cout, Ho * Wo), jnp.float32),
        grid=(N, n_h),
        in_specs=[
            pl.BlockSpec((1, Hp, Wp, C), lambda n, j: (n, 0, 0, 0)),   # resident over j
            pl.BlockSpec((ksize * ksize, C), lambda n, j: (0, 0)),
            pl.BlockSpec((1, C), lambda n, j: (0, 0)),
            pl.BlockSpec((Cout, C), lambda n, j: (0, 0)),
            pl.BlockSpec((Cout, 1), lambda n, j: (0, 0)),
        ],
        out_specs=pl.BlockSpec((1, Cout, TH * Wo), lambda n, j: (n, 0, j)),
        compiler_params=pltpu.CompilerParams(
            dimension_semantics=("parallel", "parallel"),
            vmem_limit_bytes=vmem_limit),
        cost_estimate=pl.CostEstimate(flops=flops,
                                      transcendentals=transcendentals,
                                      bytes_accessed=bytes_accessed),
    )(x_pad, wd, b1, wp, b2)

    # [N, Cout, Ho*Wo] -> [N, Cout, Ho, Wo] is a free metadata reshape (already NCHW order).
    return out_flat.reshape(N, Cout, Ho, Wo)


def _reference(x, dw_weight, g1, bt1, m1, v1, pw_weight, g2, bt2, m2, v2, eps=1e-3):
    C = x.shape[1]
    k = dw_weight.shape[-1]
    p = (k - 1) // 2
    y = lax.conv_general_dilated(
        x, dw_weight, window_strides=(1, 1), padding=[(p, p), (p, p)],
        dimension_numbers=("NCHW", "OIHW", "NCHW"), feature_group_count=C)
    s1 = (g1 / jnp.sqrt(v1 + eps)).reshape(1, -1, 1, 1)
    y = y * s1 + (bt1 - m1 * g1 / jnp.sqrt(v1 + eps)).reshape(1, -1, 1, 1)
    y = y * jax.nn.sigmoid(y)
    y = lax.conv_general_dilated(
        y, pw_weight, window_strides=(1, 1), padding="VALID",
        dimension_numbers=("NCHW", "OIHW", "NCHW"))
    s2 = (g2 / jnp.sqrt(v2 + eps)).reshape(1, -1, 1, 1)
    y = y * s2 + (bt2 - m2 * g2 / jnp.sqrt(v2 + eps)).reshape(1, -1, 1, 1)
    return y * jax.nn.sigmoid(y)


if __name__ == "__main__":
    key = jax.random.PRNGKey(0)
    N, C, H, W = 2, 4, 16, 16
    Cout, ksize = 8, 3

    ks = jax.random.split(key, 11)
    x = jax.random.normal(ks[0], (N, C, H, W), jnp.float32)

    # dconv = Conv2d(C, C, 3, groups=C, bias=False) + BN(C, eps=1e-3)
    dw_w = jax.random.normal(ks[1], (C, 1, ksize, ksize), jnp.float32) * 0.3
    g1 = 1.0 + 0.1 * jax.random.normal(ks[2], (C,), jnp.float32)
    bt1 = 0.1 * jax.random.normal(ks[3], (C,), jnp.float32)
    m1 = 0.1 * jax.random.normal(ks[4], (C,), jnp.float32)
    v1 = jnp.abs(1.0 + 0.1 * jax.random.normal(ks[5], (C,), jnp.float32))

    # pconv = Conv2d(C, Cout, 1, bias=False) + BN(Cout, eps=1e-3)
    pw_w = jax.random.normal(ks[6], (Cout, C, 1, 1), jnp.float32) * 0.3
    g2 = 1.0 + 0.1 * jax.random.normal(ks[7], (Cout,), jnp.float32)
    bt2 = 0.1 * jax.random.normal(ks[8], (Cout,), jnp.float32)
    m2 = 0.1 * jax.random.normal(ks[9], (Cout,), jnp.float32)
    v2 = jnp.abs(1.0 + 0.1 * jax.random.normal(ks[10], (Cout,), jnp.float32))

    args = (x, dw_w, g1, bt1, m1, v1, pw_w, g2, bt2, m2, v2)

    # Config A: small tile budget -> grid (2 batches, 2 H-tiles), 1 chunk per tile
    #           (exercises the resident-image / H-tile pipeline path).
    out_a = dwconv_forward(*args, tile_m=128)
    # Config B: full-image H-tile, 2 register chunks per tile (exercises the chunk loop).
    out_b = dwconv_forward(*args, tile_m=1024, chunk_rows=8)
    out_a, out_b = jax.block_until_ready((out_a, out_b))

    # Reference consumes the same bf16-rounded input the kernel sees; remaining deltas come
    # from the bf16 weights / bf16 MXU operands, hence the bf16-sized tolerance.
    x_bf = x.astype(jnp.bfloat16).astype(jnp.float32)
    ref = _reference(x_bf, dw_w, g1, bt1, m1, v1, pw_w, g2, bt2, m2, v2)
    for out in (out_a, out_b):
        assert out.shape == (N, Cout, H, W), out.shape
        err = float(jnp.max(jnp.abs(out - ref)))
        assert jnp.allclose(out, ref, atol=6e-2, rtol=6e-2), err
    print("KERNEL_OK")
</pallas_src>

<mosaic_0001>
module attributes {stable_mosaic.version = 11 : i64} {
  func.func @kernel(%arg0: i32, %arg1: i32, %arg2: memref<1x18x18x4xbf16, #tpu.memory_space<vmem>>, %arg3: memref<9x4xbf16, #tpu.memory_space<vmem>>, %arg4: memref<1x4xf32, #tpu.memory_space<vmem>>, %arg5: memref<8x4xbf16, #tpu.memory_space<vmem>>, %arg6: memref<8x1xf32, #tpu.memory_space<vmem>>, %arg7: memref<1x8x128xf32, #tpu.memory_space<vmem>>) attributes {dimension_semantics = [#tpu.dimension_semantics<parallel>, #tpu.dimension_semantics<parallel>], iteration_bounds = array<i64: 2, 2>, scalar_prefetch = 0 : i64, scratch_operands = 0 : i64, tpu.core_type = #tpu.core_type<tc>, window_params = [{transform_indices = @transform_0, window_bounds = array<i64: 1, 18, 18, 4>}, {pipeline_mode = #tpu.pipeline_mode<synchronous>, transform_indices = @transform_1, window_bounds = array<i64: 9, 4>}, {pipeline_mode = #tpu.pipeline_mode<synchronous>, transform_indices = @transform_2, window_bounds = array<i64: 1, 4>}, {pipeline_mode = #tpu.pipeline_mode<synchronous>, transform_indices = @transform_3, window_bounds = array<i64: 8, 4>}, {pipeline_mode = #tpu.pipeline_mode<synchronous>, transform_indices = @transform_4, window_bounds = array<i64: 8, 1>}, {transform_indices = @transform_5, window_bounds = array<i64: 1, 8, 128>}]} {
    %c8_i32 = arith.constant 8 : i32
    %0 = arith.muli %arg1, %c8_i32 : i32
    %1 = tpu.assume_multiple %0, 8 : i32
    %c0 = arith.constant 0 : index
    %c0_0 = arith.constant 0 : index
    %2 = vector.load %arg3[%c0, %c0_0] : memref<9x4xbf16, #tpu.memory_space<vmem>>, vector<9x4xbf16>
    %3 = arith.extf %2 : vector<9x4xbf16> to vector<9x4xf32>
    %4 = vector.extract_strided_slice %3 {offsets = [0, 0], sizes = [1, 4], strides = [1, 1]} : vector<9x4xf32> to vector<1x4xf32>
    %5 = vector.shape_cast %4 : vector<1x4xf32> to vector<4xf32>
    %6 = vector.shape_cast %5 : vector<4xf32> to vector<1x1x4xf32>
    %7 = vector.extract_strided_slice %3 {offsets = [1, 0], sizes = [1, 4], strides = [1, 1]} : vector<9x4xf32> to vector<1x4xf32>
    %8 = vector.shape_cast %7 : vector<1x4xf32> to vector<4xf32>
    %9 = vector.shape_cast %8 : vector<4xf32> to vector<1x1x4xf32>
    %10 = vector.extract_strided_slice %3 {offsets = [2, 0], sizes = [1, 4], strides = [1, 1]} : vector<9x4xf32> to vector<1x4xf32>
    %11 = vector.shape_cast %10 : vector<1x4xf32> to vector<4xf32>
    %12 = vector.shape_cast %11 : vector<4xf32> to vector<1x1x4xf32>
    %13 = vector.extract_strided_slice %3 {offsets = [3, 0], sizes = [1, 4], strides = [1, 1]} : vector<9x4xf32> to vector<1x4xf32>
    %14 = vector.shape_cast %13 : vector<1x4xf32> to vector<4xf32>
    %15 = vector.shape_cast %14 : vector<4xf32> to vector<1x1x4xf32>
    %16 = vector.extract_strided_slice %3 {offsets = [4, 0], sizes = [1, 4], strides = [1, 1]} : vector<9x4xf32> to vector<1x4xf32>
    %17 = vector.shape_cast %16 : vector<1x4xf32> to vector<4xf32>
    %18 = vector.shape_cast %17 : vector<4xf32> to vector<1x1x4xf32>
    %19 = vector.extract_strided_slice %3 {offsets = [5, 0], sizes = [1, 4], strides = [1, 1]} : vector<9x4xf32> to vector<1x4xf32>
    %20 = vector.shape_cast %19 : vector<1x4xf32> to vector<4xf32>
    %21 = vector.shape_cast %20 : vector<4xf32> to vector<1x1x4xf32>
    %22 = vector.extract_strided_slice %3 {offsets = [6, 0], sizes = [1, 4], strides = [1, 1]} : vector<9x4xf32> to vector<1x4xf32>
    %23 = vector.shape_cast %22 : vector<1x4xf32> to vector<4xf32>
    %24 = vector.shape_cast %23 : vector<4xf32> to vector<1x1x4xf32>
    %25 = vector.extract_strided_slice %3 {offsets = [7, 0], sizes = [1, 4], strides = [1, 1]} : vector<9x4xf32> to vector<1x4xf32>
    %26 = vector.shape_cast %25 : vector<1x4xf32> to vector<4xf32>
    %27 = vector.shape_cast %26 : vector<4xf32> to vector<1x1x4xf32>
    %28 = vector.extract_strided_slice %3 {offsets = [8, 0], sizes = [1, 4], strides = [1, 1]} : vector<9x4xf32> to vector<1x4xf32>
    %29 = vector.shape_cast %28 : vector<1x4xf32> to vector<4xf32>
    %30 = vector.shape_cast %29 : vector<4xf32> to vector<1x1x4xf32>
    %c0_1 = arith.constant 0 : index
    %c0_2 = arith.constant 0 : index
    %31 = vector.load %arg4[%c0_1, %c0_2] : memref<1x4xf32, #tpu.memory_space<vmem>>, vector<1x4xf32>
    %32 = vector.shape_cast %31 : vector<1x4xf32> to vector<1x1x4xf32>
    %c0_3 = arith.constant 0 : index
    %c0_4 = arith.constant 0 : index
    %33 = vector.load %arg5[%c0_3, %c0_4] : memref<8x4xbf16, #tpu.memory_space<vmem>>, vector<8x4xbf16>
    %c0_5 = arith.constant 0 : index
    %c0_6 = arith.constant 0 : index
    %34 = vector.load %arg6[%c0_5, %c0_6] : memref<8x1xf32, #tpu.memory_space<vmem>>, vector<8x1xf32>
    %c0_i32 = arith.constant 0 : i32
    %35 = arith.addi %1, %c0_i32 : i32
    %c0_i32_7 = arith.constant 0 : i32
    %36 = arith.addi %35, %c0_i32_7 : i32
    %c0_8 = arith.constant 0 : index
    %37 = arith.index_cast %36 : i32 to index
    %c0_9 = arith.constant 0 : index
    %c0_10 = arith.constant 0 : index
    %38 = vector.load %arg2[%c0_8, %37, %c0_9, %c0_10] : memref<1x18x18x4xbf16, #tpu.memory_space<vmem>>, vector<1x8x18x4xbf16>
    %39 = vector.shape_cast %38 : vector<1x8x18x4xbf16> to vector<8x18x4xbf16>
    %40 = arith.extf %39 : vector<8x18x4xbf16> to vector<8x18x4xf32>
    %41 = vector.extract_strided_slice %40 {offsets = [0, 0, 0], sizes = [8, 16, 4], strides = [1, 1, 1]} : vector<8x18x4xf32> to vector<8x16x4xf32>
    %42 = vector.broadcast %6 : vector<1x1x4xf32> to vector<8x16x4xf32>
    %43 = arith.mulf %41, %42 : vector<8x16x4xf32>
    %44 = vector.extract_strided_slice %40 {offsets = [0, 1, 0], sizes = [8, 16, 4], strides = [1, 1, 1]} : vector<8x18x4xf32> to vector<8x16x4xf32>
    %45 = vector.broadcast %9 : vector<1x1x4xf32> to vector<8x16x4xf32>
    %46 = arith.mulf %44, %45 : vector<8x16x4xf32>
    %47 = arith.addf %43, %46 : vector<8x16x4xf32>
    %48 = vector.extract_strided_slice %40 {offsets = [0, 2, 0], sizes = [8, 16, 4], strides = [1, 1, 1]} : vector<8x18x4xf32> to vector<8x16x4xf32>
    %49 = vector.broadcast %12 : vector<1x1x4xf32> to vector<8x16x4xf32>
    %50 = arith.mulf %48, %49 : vector<8x16x4xf32>
    %51 = arith.addf %47, %50 : vector<8x16x4xf32>
    %c0_i32_11 = arith.constant 0 : i32
    %52 = arith.addi %1, %c0_i32_11 : i32
    %c1_i32 = arith.constant 1 : i32
    %53 = arith.addi %52, %c1_i32 : i32
    %c0_12 = arith.constant 0 : index
    %54 = arith.index_cast %53 : i32 to index
    %c0_13 = arith.constant 0 : index
    %c0_14 = arith.constant 0 : index
    %55 = vector.load %arg2[%c0_12, %54, %c0_13, %c0_14] : memref<1x18x18x4xbf16, #tpu.memory_space<vmem>>, vector<1x8x18x4xbf16>
    %56 = vector.shape_cast %55 : vector<1x8x18x4xbf16> to vector<8x18x4xbf16>
    %57 = arith.extf %56 : vector<8x18x4xbf16> to vector<8x18x4xf32>
    %58 = vector.extract_strided_slice %57 {offsets = [0, 0, 0], sizes = [8, 16, 4], strides = [1, 1, 1]} : vector<8x18x4xf32> to vector<8x16x4xf32>
    %59 = vector.broadcast %15 : vector<1x1x4xf32> to vector<8x16x4xf32>
    %60 = arith.mulf %58, %59 : vector<8x16x4xf32>
    %61 = arith.addf %51, %60 : vector<8x16x4xf32>
    %62 = vector.extract_strided_slice %57 {offsets = [0, 1, 0], sizes = [8, 16, 4], strides = [1, 1, 1]} : vector<8x18x4xf32> to vector<8x16x4xf32>
    %63 = vector.broadcast %18 : vector<1x1x4xf32> to vector<8x16x4xf32>
    %64 = arith.mulf %62, %63 : vector<8x16x4xf32>
    %65 = arith.addf %61, %64 : vector<8x16x4xf32>
    %66 = vector.extract_strided_slice %57 {offsets = [0, 2, 0], sizes = [8, 16, 4], strides = [1, 1, 1]} : vector<8x18x4xf32> to vector<8x16x4xf32>
    %67 = vector.broadcast %21 : vector<1x1x4xf32> to vector<8x16x4xf32>
    %68 = arith.mulf %66, %67 : vector<8x16x4xf32>
    %69 = arith.addf %65, %68 : vector<8x16x4xf32>
    %c0_i32_15 = arith.constant 0 : i32
    %70 = arith.addi %1, %c0_i32_15 : i32
    %c2_i32 = arith.constant 2 : i32
    %71 = arith.addi %70, %c2_i32 : i32
    %c0_16 = arith.constant 0 : index
    %72 = arith.index_cast %71 : i32 to index
    %c0_17 = arith.constant 0 : index
    %c0_18 = arith.constant 0 : index
    %73 = vector.load %arg2[%c0_16, %72, %c0_17, %c0_18] : memref<1x18x18x4xbf16, #tpu.memory_space<vmem>>, vector<1x8x18x4xbf16>
    %74 = vector.shape_cast %73 : vector<1x8x18x4xbf16> to vector<8x18x4xbf16>
    %75 = arith.extf %74 : vector<8x18x4xbf16> to vector<8x18x4xf32>
    %76 = vector.extract_strided_slice %75 {offsets = [0, 0, 0], sizes = [8, 16, 4], strides = [1, 1, 1]} : vector<8x18x4xf32> to vector<8x16x4xf32>
    %77 = vector.broadcast %24 : vector<1x1x4xf32> to vector<8x16x4xf32>
    %78 = arith.mulf %76, %77 : vector<8x16x4xf32>
    %79 = arith.addf %69, %78 : vector<8x16x4xf32>
    %80 = vector.extract_strided_slice %75 {offsets = [0, 1, 0], sizes = [8, 16, 4], strides = [1, 1, 1]} : vector<8x18x4xf32> to vector<8x16x4xf32>
    %81 = vector.broadcast %27 : vector<1x1x4xf32> to vector<8x16x4xf32>
    %82 = arith.mulf %80, %81 : vector<8x16x4xf32>
    %83 = arith.addf %79, %82 : vector<8x16x4xf32>
    %84 = vector.extract_strided_slice %75 {offsets = [0, 2, 0], sizes = [8, 16, 4], strides = [1, 1, 1]} : vector<8x18x4xf32> to vector<8x16x4xf32>
    %85 = vector.broadcast %30 : vector<1x1x4xf32> to vector<8x16x4xf32>
    %86 = arith.mulf %84, %85 : vector<8x16x4xf32>
    %87 = arith.addf %83, %86 : vector<8x16x4xf32>
    %88 = vector.broadcast %32 : vector<1x1x4xf32> to vector<8x16x4xf32>
    %89 = arith.addf %87, %88 : vector<8x16x4xf32>
    %90 = arith.negf %89 : vector<8x16x4xf32>
    %91 = math.exp %90 : vector<8x16x4xf32>
    %cst = arith.constant 1.000000e+00 : f32
    %92 = vector.broadcast %cst : f32 to vector<8x16x4xf32>
    %93 = arith.addf %92, %91 : vector<8x16x4xf32>
    %94 = arith.divf %92, %93 : vector<8x16x4xf32>
    %95 = arith.mulf %89, %94 : vector<8x16x4xf32>
    %96 = vector.shape_cast %95 : vector<8x16x4xf32> to vector<128x4xf32>
    %97 = arith.truncf %96 : vector<128x4xf32> to vector<128x4xbf16>
    %cst_19 = arith.constant dense<0.000000e+00> : vector<8x128xf32>
    %98 = tpu.matmul %33, %97, %cst_19 {dimension_numbers = #tpu.dot_dimension_numbers<[1], [1], [0], [0], [0, 0, 1, 0], [], []>} : vector<8x4xbf16>, vector<128x4xbf16>, vector<8x128xf32> -> vector<8x128xf32>
    %99 = vector.broadcast %34 : vector<8x1xf32> to vector<8x128xf32>
    %100 = arith.addf %98, %99 : vector<8x128xf32>
    %101 = arith.negf %100 : vector<8x128xf32>
    %102 = math.exp %101 : vector<8x128xf32>
    %cst_20 = arith.constant 1.000000e+00 : f32
    %103 = vector.broadcast %cst_20 : f32 to vector<8x128xf32>
    %104 = arith.addf %103, %102 : vector<8x128xf32>
    %105 = arith.divf %103, %104 : vector<8x128xf32>
    %106 = arith.mulf %100, %105 : vector<8x128xf32>
    %c0_21 = arith.constant 0 : index
    %c0_22 = arith.constant 0 : index
    %c0_23 = arith.constant 0 : index
    %107 = vector.load %arg7[%c0_21, %c0_22, %c0_23] : memref<1x8x128xf32, #tpu.memory_space<vmem>>, vector<1x8x128xf32>
    %108 = vector.shape_cast %107 : vector<1x8x128xf32> to vector<8x128xf32>
    %109 = vector.shape_cast %106 : vector<8x128xf32> to vector<1x8x128xf32>
    tpu.vector_store %arg7[%c0_21, %c0_22, %c0_23], %109 {strides = array<i32>} : memref<1x8x128xf32, #tpu.memory_space<vmem>>, vector<1x8x128xf32>,
    return
  }
  func.func @transform_0(%arg0: i32, %arg1: i32) -> (i32, i32, i32, i32) {
    %c0_i32 = arith.constant 0 : i32
    %c0_i32_0 = arith.constant 0 : i32
    %c0_i32_1 = arith.constant 0 : i32
    %c0_i32_2 = arith.constant 0 : i32
    return %arg0, %c0_i32, %c0_i32_0, %c0_i32_1 : i32, i32, i32, i32
  }
  func.func @transform_1(%arg0: i32, %arg1: i32) -> (i32, i32) {
    %c0_i32 = arith.constant 0 : i32
    %c0_i32_0 = arith.constant 0 : i32
    %c0_i32_1 = arith.constant 0 : i32
    return %c0_i32, %c0_i32_0 : i32, i32
  }
  func.func @transform_2(%arg0: i32, %arg1: i32) -> (i32, i32) {
    %c0_i32 = arith.constant 0 : i32
    %c0_i32_0 = arith.constant 0 : i32
    %c0_i32_1 = arith.constant 0 : i32
    return %c0_i32, %c0_i32_0 : i32, i32
  }
  func.func @transform_3(%arg0: i32, %arg1: i32) -> (i32, i32) {
    %c0_i32 = arith.constant 0 : i32
    %c0_i32_0 = arith.constant 0 : i32
    %c0_i32_1 = arith.constant 0 : i32
    return %c0_i32, %c0_i32_0 : i32, i32
  }
  func.func @transform_4(%arg0: i32, %arg1: i32) -> (i32, i32) {
    %c0_i32 = arith.constant 0 : i32
    %c0_i32_0 = arith.constant 0 : i32
    %c0_i32_1 = arith.constant 0 : i32
    return %c0_i32, %c0_i32_0 : i32, i32
  }
  func.func @transform_5(%arg0: i32, %arg1: i32) -> (i32, i32, i32) {
    %c0_i32 = arith.constant 0 : i32
    %c0_i32_0 = arith.constant 0 : i32
    return %arg0, %c0_i32, %arg1 : i32, i32, i32
  }
}

</mosaic_0001>

<llo_original>
// kernel: tpu_custom_call.1
$region0: #{tpu_custom_call.1}
  #allocation0 [shape = 'u32[]', space=smem, size = 0x4, offset = 0x4, fixed_abs, tag = 'smem constant byte address 0x4 - core index']
  #allocation1 [shape = 'u32[144,128]{1,0:T(1,128)}', space=vmem, size = 0x12000, scoped, tag = 'internal scratch']
  %s0 = inlined_call_operand.vmem [shape: bf16[2,18,18,4], index: 0, kind: input, shape index: {}]
  %s1 = inlined_call_operand.vmem [shape: bf16[9,4], index: 1, kind: input, shape index: {}]
  %s2 = inlined_call_operand.vmem [shape: f32[1,4], index: 2, kind: input, shape index: {}]
  %s3 = inlined_call_operand.vmem [shape: bf16[8,4], index: 3, kind: input, shape index: {}]
  %s4 = inlined_call_operand.vmem [shape: f32[8,1], index: 4, kind: input, shape index: {}]
  %s5 = inlined_call_operand.hbm [shape: f32[2,8,256], index: 5, kind: output, shape index: {}]
  %s6 = sld [smem:[#allocation0]]
  $region53: #{tpu_custom_call.1} parent=0
    _
  %s8 = ssub.s32 1, %s6
  %s9 = scalar_select 0, %s8, %s6
  $region1: #{tpu_custom_call.1} parent=0
    #allocation2 [shape = 'u8[8192]{0}', space=vmem, size = 0x2000, scoped, tag = 'output window, operand 0']
    #allocation3 [shape = 's32[2]{0}', space=sflag, size = 0x8, scoped, tag = 'scoped memory for tpu_custom_call.1']
    %10 = vsyncpa [#allocation3], 0
    %s11 = scalar_lea.sflag [#allocation3], 1
    %12 = vsyncpa %s11, 0
    loop: start=0, step=1, limit=6
    $region2: #{tpu_custom_call.1} parent=1 // loop_pre_header
      _
    $region3: #{tpu_custom_call.1} parent=1 // loop_header
      %s14 = sphi 0, %s18
      %p15 = scmp.ge.s32.totalorder %s14, 6
      %s21 = sphi 0, %s33
      %s22 = sphi 0, %s29
      %s23 = sphi 0, %s21
      %s24 = sphi 0, %s22
      %s25 = sphi 0, %s23
      %s26 = sphi 0, %s24
      %s36 = sphi 0, %s38
      %s39 = sphi 0, %s36
      %s40 = sphi 0, %s39
      %s56 = sphi 0, %s40
      %s60 = sphi 0, %s60
      %s62 = sphi 0, %s60
      %s63 = sphi 0, %s62
      %s77 = sphi 0, %s63
      %s81 = sphi 0, %s81
      %s83 = sphi 0, %s81
      %s84 = sphi 0, %s83
      %s98 = sphi 0, %s84
      %s102 = sphi 0, %s102
      %s104 = sphi 0, %s102
      %s105 = sphi 0, %s104
      %s119 = sphi 0, %s105
      %s123 = sphi 0, %s123
      %s125 = sphi 0, %s123
      %s126 = sphi 0, %s125
      %s140 = sphi 0, %s126
      %s148 = sphi 0, %s150
      %s151 = sphi 0, %s148
      %s152 = sphi 0, %s151
      %s168 = sphi 0, %s152
    $region4: #{tpu_custom_call.1} parent=1 // loop_header_branch
      %17 = sbr.rel (%p15) target = $region8
    $region5: #{tpu_custom_call.1} parent=1 // loop_body
      %s19 = ssub.s32 %s14, 1
      %s20 = ssub.s32 %s14, 2
      %s27 = sadd.s32 1, %s22
      %p28 = scmp.ge.s32.totalorder %s27, 2
      %s29 = scalar_select %p28, 0, %s27
      %s30 = sadd.s32 1, %s21
      %s31 = scalar_select %p28, %s30, %s21
      %p32 = scmp.ge.s32.totalorder %s31, 2
      %s33 = scalar_select %p32, 0, %s31
      %s34 = ssub.s32 %s21, %s33
      %p35 = scmp.eq.s32.totalorder %s34, 0
      %s37 = sadd.s32 %s36, 1
      %s38 = scalar_select %p35, %s36, %s37
      %p41 = pneg %p35
      %p42 = scmp.eq.s32.totalorder %s14, 3
      %p43 = por %p41, %p42
      %p44 = scmp.ne.s32.totalorder %s36, %s39
      %p45 = scmp.eq.s32.totalorder %s14, 0
      %p46 = por %p44, %p45
      %p47 = scmp.ne.s32.totalorder %s36, %s39
      %p48 = scmp.eq.s32.totalorder %s19, 3
      %p49 = por %p47, %p48
      %p50 = scmp.ne.s32.totalorder %s39, %s40
      %p51 = scmp.eq.s32.totalorder %s19, 0
      %p52 = por %p50, %p51
      %p53 = scmp.ne.s32.totalorder %s39, %s40
      %p54 = scmp.eq.s32.totalorder %s20, 3
      %p55 = por %p53, %p54
      %p57 = scmp.ne.s32.totalorder %s40, %s56
      %p58 = scmp.eq.s32.totalorder %s20, 0
      %p59 = por %p57, %p58
      %s61 = sadd.s32 %s60, 1
      %p64 = scmp.eq.s32.totalorder %s14, 3
      %p65 = scmp.ne.s32.totalorder %s60, %s62
      %p66 = scmp.eq.s32.totalorder %s14, 0
      %p67 = por %p65, %p66
      %p68 = scmp.ne.s32.totalorder %s60, %s62
      %p69 = scmp.eq.s32.totalorder %s19, 3
      %p70 = por %p68, %p69
      %p71 = scmp.ne.s32.totalorder %s62, %s63
      %p72 = scmp.eq.s32.totalorder %s19, 0
      %p73 = por %p71, %p72
      %p74 = scmp.ne.s32.totalorder %s62, %s63
      %p75 = scmp.eq.s32.totalorder %s20, 3
      %p76 = por %p74, %p75
      %p78 = scmp.ne.s32.totalorder %s63, %s77
      %p79 = scmp.eq.s32.totalorder %s20, 0
      %p80 = por %p78, %p79
      %s82 = sadd.s32 %s81, 1
      %p85 = scmp.eq.s32.totalorder %s14, 3
      %p86 = scmp.ne.s32.totalorder %s81, %s83
      %p87 = scmp.eq.s32.totalorder %s14, 0
      %p88 = por %p86, %p87
      %p89 = scmp.ne.s32.totalorder %s81, %s83
      %p90 = scmp.eq.s32.totalorder %s19, 3
      %p91 = por %p89, %p90
      %p92 = scmp.ne.s32.totalorder %s83, %s84
      %p93 = scmp.eq.s32.totalorder %s19, 0
      %p94 = por %p92, %p93
      %p95 = scmp.ne.s32.totalorder %s83, %s84
      %p96 = scmp.eq.s32.totalorder %s20, 3
      %p97 = por %p95, %p96
      %p99 = scmp.ne.s32.totalorder %s84, %s98
      %p100 = scmp.eq.s32.totalorder %s20, 0
      %p101 = por %p99, %p100
      %s103 = sadd.s32 %s102, 1
      %p106 = scmp.eq.s32.totalorder %s14, 3
      %p107 = scmp.ne.s32.totalorder %s102, %s104
      %p108 = scmp.eq.s32.totalorder %s14, 0
      %p109 = por %p107, %p108
      %p110 = scmp.ne.s32.totalorder %s102, %s104
      %p111 = scmp.eq.s32.totalorder %s19, 3
      %p112 = por %p110, %p111
      %p113 = scmp.ne.s32.totalorder %s104, %s105
      %p114 = scmp.eq.s32.totalorder %s19, 0
      %p115 = por %p113, %p114
      %p116 = scmp.ne.s32.totalorder %s104, %s105
      %p117 = scmp.eq.s32.totalorder %s20, 3
      %p118 = por %p116, %p117
      %p120 = scmp.ne.s32.totalorder %s105, %s119
      %p121 = scmp.eq.s32.totalorder %s20, 0
      %p122 = por %p120, %p121
      %s124 = sadd.s32 %s123, 1
      %p127 = scmp.eq.s32.totalorder %s14, 3
      %p128 = scmp.ne.s32.totalorder %s123, %s125
      %p129 = scmp.eq.s32.totalorder %s14, 0
      %p130 = por %p128, %p129
      %p131 = scmp.ne.s32.totalorder %s123, %s125
      %p132 = scmp.eq.s32.totalorder %s19, 3
      %p133 = por %p131, %p132
      %p134 = scmp.ne.s32.totalorder %s125, %s126
      %p135 = scmp.eq.s32.totalorder %s19, 0
      %p136 = por %p134, %p135
      %p137 = scmp.ne.s32.totalorder %s125, %s126
      %p138 = scmp.eq.s32.totalorder %s20, 3
      %p139 = por %p137, %p138
      %p141 = scmp.ne.s32.totalorder %s126, %s140
      %p142 = scmp.eq.s32.totalorder %s20, 0
      %p143 = por %p141, %p142
      %s144 = ssub.s32 %s21, %s33
      %s145 = ssub.s32 %s22, %s29
      %s146 = sor.u32 %s144, %s145
      %p147 = scmp.eq.s32.totalorder %s146, 0
      %s149 = sadd.s32 %s148, 1
      %s150 = scalar_select %p147, %s148, %s149
      %p153 = pneg %p147
      %p154 = scmp.eq.s32.totalorder %s14, 3
      %p155 = por %p153, %p154
      %p156 = scmp.ne.s32.totalorder %s148, %s151
      %p157 = scmp.eq.s32.totalorder %s14, 0
      %p158 = por %p156, %p157
      %p159 = scmp.ne.s32.totalorder %s148, %s151
      %p160 = scmp.eq.s32.totalorder %s19, 3
      %p161 = por %p159, %p160
      %p162 = scmp.ne.s32.totalorder %s151, %s152
      %p163 = scmp.eq.s32.totalorder %s19, 0
      %p164 = por %p162, %p163
      %p165 = scmp.ne.s32.totalorder %s151, %s152
      %p166 = scmp.eq.s32.totalorder %s20, 3
      %p167 = por %p165, %p166
      %p169 = scmp.ne.s32.totalorder %s152, %s168
      %p170 = scmp.eq.s32.totalorder %s20, 0
      %p171 = por %p169, %p170
      %p172 = scmp.le.s32.totalorder 1, %s14
      %p173 = scmp.lt.s32.totalorder %s14, 5
      %p174 = pnand %p172, %p173
      %p175 = pneg %p174
      // Predicated region
      $region9: #{tpu_custom_call.1} parent=5 // pred_check
        _
      $region10: #{tpu_custom_call.1} parent=5 // pred_check_branch
        %177 = sbr.rel (%p174) target = $region12
      $region11: #{tpu_custom_call.1} parent=5 // pred_region
        %s178 = ssub.s32 %s14, 1
        // Predicated region
        $region13: #{tpu_custom_call.1} parent=11 // pred_check
          %p179 = pneg %p73
        $region14: #{tpu_custom_call.1} parent=11 // pred_check_branch
          %181 = sbr.rel (%p179) target = $region16
        $region15: #{tpu_custom_call.1} parent=11 // pred_region
          _
        $region16: #{tpu_custom_call.1} parent=11 // pred_fallthru
          _
        // Predicated region
        $region17: #{tpu_custom_call.1} parent=11 // pred_check
          %p182 = pneg %p94
        $region18: #{tpu_custom_call.1} parent=11 // pred_check_branch
          %184 = sbr.rel (%p182) target = $region20
        $region19: #{tpu_custom_call.1} parent=11 // pred_region
          _
        $region20: #{tpu_custom_call.1} parent=11 // pred_fallthru
          _
        // Predicated region
        $region21: #{tpu_custom_call.1} parent=11 // pred_check
          %p185 = pneg %p115
        $region22: #{tpu_custom_call.1} parent=11 // pred_check_branch
          %187 = sbr.rel (%p185) target = $region24
        $region23: #{tpu_custom_call.1} parent=11 // pred_region
          _
        $region24: #{tpu_custom_call.1} parent=11 // pred_fallthru
          _
        // Predicated region
        $region25: #{tpu_custom_call.1} parent=11 // pred_check
          %p188 = pneg %p136
        $region26: #{tpu_custom_call.1} parent=11 // pred_check_branch
          %190 = sbr.rel (%p188) target = $region28
        $region27: #{tpu_custom_call.1} parent=11 // pred_region
          _
        $region28: #{tpu_custom_call.1} parent=11 // pred_fallthru
          _
      $region12: #{tpu_custom_call.1} parent=5 // pred_fallthru
        _
      %p191 = scmp.lt.s32.totalorder %s14, 4
      // Predicated region
      $region29: #{tpu_custom_call.1} parent=5 // pred_check
        %p192 = pneg %p191
      $region30: #{tpu_custom_call.1} parent=5 // pred_check_branch
        %194 = sbr.rel (%p192) target = $region32
      $region31: #{tpu_custom_call.1} parent=5 // pred_region
        // Predicated region
        $region33: #{tpu_custom_call.1} parent=31 // pred_check
          %p195 = pneg %p46
        $region34: #{tpu_custom_call.1} parent=31 // pred_check_branch
          %197 = sbr.rel (%p195) target = $region36
        $region35: #{tpu_custom_call.1} parent=31 // pred_region
          %p198 = scmp.lt.s32.totalorder %s21, 1
          %s199 = scalar_select %p198, %s21, 1
          %s200 = smul.addr %s199, 54
          %s201 = smul.addr %s200, 4
          %s202 = scalar_lea.vmem %s0, %s201
        $region36: #{tpu_custom_call.1} parent=31 // pred_fallthru
          _
      $region32: #{tpu_custom_call.1} parent=5 // pred_fallthru
        _
      %p203 = scmp.le.s32.totalorder 1, %s14
      %p204 = scmp.lt.s32.totalorder %s14, 5
      %p205 = pnand %p203, %p204
      %p206 = pneg %p205
      // Predicated region
      $region37: #{tpu_custom_call.1} parent=5 // pred_check
        _
      $region38: #{tpu_custom_call.1} parent=5 // pred_check_branch
        %208 = sbr.rel (%p205) target = $region40
      $region39: #{tpu_custom_call.1} parent=5 // pred_region
        %s209 = ssub.s32 %s14, 1
        %p210 = scmp.lt.s32.totalorder %s23, 1
        %s211 = scalar_select %p210, %s23, 1
        %s212 = smul.addr %s211, 54
        %s213 = smul.addr %s212, 4
        %s214 = scalar_lea.vmem %s0, %s213
        %p215 = pneg %p52
        %p216 = pneg %p49
        %p217 = pneg %p73
        %p218 = pneg %p70
        %p219 = pneg %p94
        %p220 = pneg %p91
        %p221 = pneg %p115
        %p222 = pneg %p112
        %p223 = pneg %p136
        %p224 = pneg %p133
        %p225 = pneg %p164
        %p226 = pneg %p161
        %s227 = sand.u32 %s151, 1
        %s228 = scalar_lea.sflag [#allocation3], %s227
        %s229 = sand.u32 %s151, 1
        %s230 = smul.addr %s229, 8
        %s231 = scalar_lea.vmem [#allocation2], %s230
        %p232 = scmp.lt.s32.totalorder %s23, 1
        %s233 = scalar_select %p232, %s23, 1
        %s234 = smul.addr %s233, 54
        %s235 = smul.addr %s234, 4
        %s236 = scalar_lea.vmem %s0, %s235
        %s238 = smul.u32 %s24, 8
        %v239 = vld [vmem:[%s1] sm:$0xf]
        %v240 = vld [vmem:[%s1 + $0x4] sm:$0x1]
        %v241 = vunpack.c.l.bf16 %v239
        %v242 = vunpack.c.l.bf16 %v240
        %v243 = vld [vmem:[%s2] sm:$0x1]
        %v244 = vld [vmem:[%s3] sm:$0xf]
        %v245 = vld [vmem:[%s4] sm:$0xff]
        %s246 = smul.u32 %s238, 3
        %s247 = smul.addr %s246, 4
        %s248 = scalar_lea.vmem %s236, %s247
        %v249 = vld [vmem:[%s248] sm:$0xf]
        %v250 = vld [vmem:[%s248 + $0x4] sm:$0xf]
        %v251 = vld [vmem:[%s248 + $0x8] sm:$0x1]
        %v252 = vld [vmem:[%s248 + $0xc] sm:$0xf]
        %v253 = vld [vmem:[%s248 + $0x10] sm:$0xf]
        %v254 = vld [vmem:[%s248 + $0x14] sm:$0x1]
        %v255 = vld [vmem:[%s248 + $0x18] sm:$0xf]
        %v256 = vld [vmem:[%s248 + $0x1c] sm:$0xf]
        %v257 = vld [vmem:[%s248 + $0x20] sm:$0x1]
        %v258 = vld [vmem:[%s248 + $0x24] sm:$0xf]
        %v259 = vld [vmem:[%s248 + $0x28] sm:$0xf]
        %v260 = vld [vmem:[%s248 + $0x2c] sm:$0x1]
        %v261 = vld [vmem:[%s248 + $0x30] sm:$0xf]
        %v262 = vld [vmem:[%s248 + $0x34] sm:$0xf]
        %v263 = vld [vmem:[%s248 + $0x38] sm:$0x1]
        %v264 = vld [vmem:[%s248 + $0x3c] sm:$0xf]
        %v265 = vld [vmem:[%s248 + $0x40] sm:$0xf]
        %v266 = vld [vmem:[%s248 + $0x44] sm:$0x1]
        %v267 = vld [vmem:[%s248 + $0x48] sm:$0xf]
        %v268 = vld [vmem:[%s248 + $0x4c] sm:$0xf]
        %v269 = vld [vmem:[%s248 + $0x50] sm:$0x1]
        %v270 = vld [vmem:[%s248 + $0x54] sm:$0xf]
        %v271 = vld [vmem:[%s248 + $0x58] sm:$0xf]
        %v272 = vld [vmem:[%s248 + $0x5c] sm:$0x1]
        %v273 = vunpack.c.l.bf16 %v249
        %v274 = vunpack.c.l.bf16 %v250
        %v275 = vunpack.c.l.bf16 %v251
        %v276 = vunpack.c.l.bf16 %v252
        %v277 = vunpack.c.l.bf16 %v253
        %v278 = vunpack.c.l.bf16 %v254
        %v279 = vunpack.c.l.bf16 %v255
        %v280 = vunpack.c.l.bf16 %v256
        %v281 = vunpack.c.l.bf16 %v257
        %v282 = vunpack.c.l.bf16 %v258
        %v283 = vunpack.c.l.bf16 %v259
        %v284 = vunpack.c.l.bf16 %v260
        %v285 = vunpack.c.l.bf16 %v261
        %v286 = vunpack.c.l.bf16 %v262
        %v287 = vunpack.c.l.bf16 %v263
        %v288 = vunpack.c.l.bf16 %v264
        %v289 = vunpack.c.l.bf16 %v265
        %v290 = vunpack.c.l.bf16 %v266
        %v291 = vunpack.c.l.bf16 %v267
        %v292 = vunpack.c.l.bf16 %v268
        %v293 = vunpack.c.l.bf16 %v269
        %v294 = vunpack.c.l.bf16 %v270
        %v295 = vunpack.c.l.bf16 %v271
        %v296 = vunpack.c.l.bf16 %v272
        %v297 = vlaneseq
        %v298 = vshrl.u32 %v297, 7
        %v299 = vsub.s32 0, %v298
        %v300 = vrot.slane %v241, %v299
        %v301 = vmul.f32 %v273, %v300
        %v302 = vmul.f32 %v274, %v300
        %v303 = vmul.f32 %v276, %v300
        %v304 = vmul.f32 %v277, %v300
        %v305 = vmul.f32 %v279, %v300
        %v306 = vmul.f32 %v280, %v300
        %v307 = vmul.f32 %v282, %v300
        %v308 = vmul.f32 %v283, %v300
        %v309 = vmul.f32 %v285, %v300
        %v310 = vmul.f32 %v286, %v300
        %v311 = vmul.f32 %v288, %v300
        %v312 = vmul.f32 %v289, %v300
        %v313 = vmul.f32 %v291, %v300
        %v314 = vmul.f32 %v292, %v300
        %v315 = vmul.f32 %v294, %v300
        %v316 = vmul.f32 %v295, %v300
        %v317 = vlaneseq
        %v318 = vshrl.u32 %v317, 7
        %v319 = vsub.s32 1, %v318
        %v320 = vrot.slane %v241, %v319
        %v321 = vmul.f32 %v273, %v320
        %v322 = vmul.f32 %v274, %v320
        %v323 = vmul.f32 %v275, %v320
        %v324 = vmul.f32 %v276, %v320
        %v325 = vmul.f32 %v277, %v320
        %v326 = vmul.f32 %v278, %v320
        %v327 = vmul.f32 %v279, %v320
        %v328 = vmul.f32 %v280, %v320
        %v329 = vmul.f32 %v281, %v320
        %v330 = vmul.f32 %v282, %v320
        %v331 = vmul.f32 %v283, %v320
        %v332 = vmul.f32 %v284, %v320
        %v333 = vmul.f32 %v285, %v320
        %v334 = vmul.f32 %v286, %v320
        %v335 = vmul.f32 %v287, %v320
        %v336 = vmul.f32 %v288, %v320
        %v337 = vmul.f32 %v289, %v320
        %v338 = vmul.f32 %v290, %v320
        %v339 = vmul.f32 %v291, %v320
        %v340 = vmul.f32 %v292, %v320
        %v341 = vmul.f32 %v293, %v320
        %v342 = vmul.f32 %v294, %v320
        %v343 = vmul.f32 %v295, %v320
        %v344 = vmul.f32 %v296, %v320
        %vm369 = vcmask 1046528
        %v370 = vrot.slane %v321, 1
        %v371 = vrot.slane %v322, 1
        %v372 = vsel %vm369, %v370, %v371
        %v373 = vrot.slane %v323, 1
        %v374 = vsel %vm369, %v371, %v373
        %v375 = vrot.slane %v324, 1
        %v376 = vrot.slane %v325, 1
        %v377 = vsel %vm369, %v375, %v376
        %v378 = vrot.slane %v326, 1
        %v379 = vsel %vm369, %v376, %v378
        %v380 = vrot.slane %v327, 1
        %v381 = vrot.slane %v328, 1
        %v382 = vsel %vm369, %v380, %v381
        %v383 = vrot.slane %v329, 1
        %v384 = vsel %vm369, %v381, %v383
        %v385 = vrot.slane %v330, 1
        %v386 = vrot.slane %v331, 1
        %v387 = vsel %vm369, %v385, %v386
        %v388 = vrot.slane %v332, 1
        %v389 = vsel %vm369, %v386, %v388
        %v390 = vrot.slane %v333, 1
        %v391 = vrot.slane %v334, 1
        %v392 = vsel %vm369, %v390, %v391
        %v393 = vrot.slane %v335, 1
        %v394 = vsel %vm369, %v391, %v393
        %v395 = vrot.slane %v336, 1
        %v396 = vrot.slane %v337, 1
        %v397 = vsel %vm369, %v395, %v396
        %v398 = vrot.slane %v338, 1
        %v399 = vsel %vm369, %v396, %v398
        %v400 = vrot.slane %v339, 1
        %v401 = vrot.slane %v340, 1
        %v402 = vsel %vm369, %v400, %v401
        %v403 = vrot.slane %v341, 1
        %v404 = vsel %vm369, %v401, %v403
        %v405 = vrot.slane %v342, 1
        %v406 = vrot.slane %v343, 1
        %v407 = vsel %vm369, %v405, %v406
        %v408 = vrot.slane %v344, 1
        %v409 = vsel %vm369, %v406, %v408
        %v426 = vadd.f32 %v301, %v372
        %v427 = vadd.f32 %v302, %v374
        %v428 = vadd.f32 %v303, %v377
        %v429 = vadd.f32 %v304, %v379
        %v430 = vadd.f32 %v305, %v382
        %v431 = vadd.f32 %v306, %v384
        %v432 = vadd.f32 %v307, %v387
        %v433 = vadd.f32 %v308, %v389
        %v434 = vadd.f32 %v309, %v392
        %v435 = vadd.f32 %v310, %v394
        %v436 = vadd.f32 %v311, %v397
        %v437 = vadd.f32 %v312, %v399
        %v438 = vadd.f32 %v313, %v402
        %v439 = vadd.f32 %v314, %v404
        %v440 = vadd.f32 %v315, %v407
        %v441 = vadd.f32 %v316, %v409
        %v442 = vlaneseq
        %v443 = vshrl.u32 %v442, 7
        %v444 = vsub.s32 2, %v443
        %v445 = vrot.slane %v241, %v444
        %v446 = vmul.f32 %v273, %v445
        %v447 = vmul.f32 %v274, %v445
        %v448 = vmul.f32 %v275, %v445
        %v449 = vmul.f32 %v276, %v445
        %v450 = vmul.f32 %v277, %v445
        %v451 = vmul.f32 %v278, %v445
        %v452 = vmul.f32 %v279, %v445
        %v453 = vmul.f32 %v280, %v445
        %v454 = vmul.f32 %v281, %v445
        %v455 = vmul.f32 %v282, %v445
        %v456 = vmul.f32 %v283, %v445
        %v457 = vmul.f32 %v284, %v445
        %v458 = vmul.f32 %v285, %v445
        %v459 = vmul.f32 %v286, %v445
        %v460 = vmul.f32 %v287, %v445
        %v461 = vmul.f32 %v288, %v445
        %v462 = vmul.f32 %v289, %v445
        %v463 = vmul.f32 %v290, %v445
        %v464 = vmul.f32 %v291, %v445
        %v465 = vmul.f32 %v292, %v445
        %v466 = vmul.f32 %v293, %v445
        %v467 = vmul.f32 %v294, %v445
        %v468 = vmul.f32 %v295, %v445
        %v469 = vmul.f32 %v296, %v445
        %vm494 = vcmask 1045504
        %v495 = vrot.slane %v446, 2
        %v496 = vrot.slane %v447, 2
        %v497 = vsel %vm494, %v495, %v496
        %v498 = vrot.slane %v448, 2
        %v499 = vsel %vm494, %v496, %v498
        %v500 = vrot.slane %v449, 2
        %v501 = vrot.slane %v450, 2
        %v502 = vsel %vm494, %v500, %v501
        %v503 = vrot.slane %v451, 2
        %v504 = vsel %vm494, %v501, %v503
        %v505 = vrot.slane %v452, 2
        %v506 = vrot.slane %v453, 2
        %v507 = vsel %vm494, %v505, %v506
        %v508 = vrot.slane %v454, 2
        %v509 = vsel %vm494, %v506, %v508
        %v510 = vrot.slane %v455, 2
        %v511 = vrot.slane %v456, 2
        %v512 = vsel %vm494, %v510, %v511
        %v513 = vrot.slane %v457, 2
        %v514 = vsel %vm494, %v511, %v513
        %v515 = vrot.slane %v458, 2
        %v516 = vrot.slane %v459, 2
        %v517 = vsel %vm494, %v515, %v516
        %v518 = vrot.slane %v460, 2
        %v519 = vsel %vm494, %v516, %v518
        %v520 = vrot.slane %v461, 2
        %v521 = vrot.slane %v462, 2
        %v522 = vsel %vm494, %v520, %v521
        %v523 = vrot.slane %v463, 2
        %v524 = vsel %vm494, %v521, %v523
        %v525 = vrot.slane %v464, 2
        %v526 = vrot.slane %v465, 2
        %v527 = vsel %vm494, %v525, %v526
        %v528 = vrot.slane %v466, 2
        %v529 = vsel %vm494, %v526, %v528
        %v530 = vrot.slane %v467, 2
        %v531 = vrot.slane %v468, 2
        %v532 = vsel %vm494, %v530, %v531
        %v533 = vrot.slane %v469, 2
        %v534 = vsel %vm494, %v531, %v533
        %v551 = vadd.f32 %v426, %v497
        %v552 = vadd.f32 %v427, %v499
        %v553 = vadd.f32 %v428, %v502
        %v554 = vadd.f32 %v429, %v504
        %v555 = vadd.f32 %v430, %v507
        %v556 = vadd.f32 %v431, %v509
        %v557 = vadd.f32 %v432, %v512
        %v558 = vadd.f32 %v433, %v514
        %v559 = vadd.f32 %v434, %v517
        %v560 = vadd.f32 %v435, %v519
        %v561 = vadd.f32 %v436, %v522
        %v562 = vadd.f32 %v437, %v524
        %v563 = vadd.f32 %v438, %v527
        %v564 = vadd.f32 %v439, %v529
        %v565 = vadd.f32 %v440, %v532
        %v566 = vadd.f32 %v441, %v534
        %s567 = sadd.s32 %s238, 1
        %s568 = smul.u32 %s567, 3
        %s569 = smul.addr %s568, 4
        %s570 = scalar_lea.vmem %s236, %s569
        %v571 = vld [vmem:[%s570] sm:$0xf]
        %v572 = vld [vmem:[%s570 + $0x4] sm:$0xf]
        %v573 = vld [vmem:[%s570 + $0x8] sm:$0x1]
        %v574 = vld [vmem:[%s570 + $0xc] sm:$0xf]
        %v575 = vld [vmem:[%s570 + $0x10] sm:$0xf]
        %v576 = vld [vmem:[%s570 + $0x14] sm:$0x1]
        %v577 = vld [vmem:[%s570 + $0x18] sm:$0xf]
        %v578 = vld [vmem:[%s570 + $0x1c] sm:$0xf]
        %v579 = vld [vmem:[%s570 + $0x20] sm:$0x1]
        %v580 = vld [vmem:[%s570 + $0x24] sm:$0xf]
        %v581 = vld [vmem:[%s570 + $0x28] sm:$0xf]
        %v582 = vld [vmem:[%s570 + $0x2c] sm:$0x1]
        %v583 = vld [vmem:[%s570 + $0x30] sm:$0xf]
        %v584 = vld [vmem:[%s570 + $0x34] sm:$0xf]
        %v585 = vld [vmem:[%s570 + $0x38] sm:$0x1]
        %v586 = vld [vmem:[%s570 + $0x3c] sm:$0xf]
        %v587 = vld [vmem:[%s570 + $0x40] sm:$0xf]
        %v588 = vld [vmem:[%s570 + $0x44] sm:$0x1]
        %v589 = vld [vmem:[%s570 + $0x48] sm:$0xf]
        %v590 = vld [vmem:[%s570 + $0x4c] sm:$0xf]
        %v591 = vld [vmem:[%s570 + $0x50] sm:$0x1]
        %v592 = vld [vmem:[%s570 + $0x54] sm:$0xf]
        %v593 = vld [vmem:[%s570 + $0x58] sm:$0xf]
        %v594 = vld [vmem:[%s570 + $0x5c] sm:$0x1]
        %v595 = vunpack.c.l.bf16 %v571
        %v596 = vunpack.c.l.bf16 %v572
        %v597 = vunpack.c.l.bf16 %v573
        %v598 = vunpack.c.l.bf16 %v574
        %v599 = vunpack.c.l.bf16 %v575
        %v600 = vunpack.c.l.bf16 %v576
        %v601 = vunpack.c.l.bf16 %v577
        %v602 = vunpack.c.l.bf16 %v578
        %v603 = vunpack.c.l.bf16 %v579
        %v604 = vunpack.c.l.bf16 %v580
        %v605 = vunpack.c.l.bf16 %v581
        %v606 = vunpack.c.l.bf16 %v582
        %v607 = vunpack.c.l.bf16 %v583
        %v608 = vunpack.c.l.bf16 %v584
        %v609 = vunpack.c.l.bf16 %v585
        %v610 = vunpack.c.l.bf16 %v586
        %v611 = vunpack.c.l.bf16 %v587
        %v612 = vunpack.c.l.bf16 %v588
        %v613 = vunpack.c.l.bf16 %v589
        %v614 = vunpack.c.l.bf16 %v590
        %v615 = vunpack.c.l.bf16 %v591
        %v616 = vunpack.c.l.bf16 %v592
        %v617 = vunpack.c.l.bf16 %v593
        %v618 = vunpack.c.l.bf16 %v594
        %v619 = vlaneseq
        %v620 = vshrl.u32 %v619, 7
        %v621 = vsub.s32 3, %v620
        %v622 = vrot.slane %v241, %v621
        %v623 = vmul.f32 %v595, %v622
        %v624 = vmul.f32 %v596, %v622
        %v625 = vmul.f32 %v598, %v622
        %v626 = vmul.f32 %v599, %v622
        %v627 = vmul.f32 %v601, %v622
        %v628 = vmul.f32 %v602, %v622
        %v629 = vmul.f32 %v604, %v622
        %v630 = vmul.f32 %v605, %v622
        %v631 = vmul.f32 %v607, %v622
        %v632 = vmul.f32 %v608, %v622
        %v633 = vmul.f32 %v610, %v622
        %v634 = vmul.f32 %v611, %v622
        %v635 = vmul.f32 %v613, %v622
        %v636 = vmul.f32 %v614, %v622
        %v637 = vmul.f32 %v616, %v622
        %v638 = vmul.f32 %v617, %v622
        %v639 = vadd.f32 %v551, %v623
        %v640 = vadd.f32 %v552, %v624
        %v641 = vadd.f32 %v553, %v625
        %v642 = vadd.f32 %v554, %v626
        %v643 = vadd.f32 %v555, %v627
        %v644 = vadd.f32 %v556, %v628
        %v645 = vadd.f32 %v557, %v629
        %v646 = vadd.f32 %v558, %v630
        %v647 = vadd.f32 %v559, %v631
        %v648 = vadd.f32 %v560, %v632
        %v649 = vadd.f32 %v561, %v633
        %v650 = vadd.f32 %v562, %v634
        %v651 = vadd.f32 %v563, %v635
        %v652 = vadd.f32 %v564, %v636
        %v653 = vadd.f32 %v565, %v637
        %v654 = vadd.f32 %v566, %v638
        %v655 = vlaneseq
        %v656 = vshrl.u32 %v655, 7
        %v657 = vsub.s32 4, %v656
        %v658 = vrot.slane %v241, %v657
        %v659 = vmul.f32 %v595, %v658
        %v660 = vmul.f32 %v596, %v658
        %v661 = vmul.f32 %v597, %v658
        %v662 = vmul.f32 %v598, %v658
        %v663 = vmul.f32 %v599, %v658
        %v664 = vmul.f32 %v600, %v658
        %v665 = vmul.f32 %v601, %v658
        %v666 = vmul.f32 %v602, %v658
        %v667 = vmul.f32 %v603, %v658
        %v668 = vmul.f32 %v604, %v658
        %v669 = vmul.f32 %v605, %v658
        %v670 = vmul.f32 %v606, %v658
        %v671 = vmul.f32 %v607, %v658
        %v672 = vmul.f32 %v608, %v658
        %v673 = vmul.f32 %v609, %v658
        %v674 = vmul.f32 %v610, %v658
        %v675 = vmul.f32 %v611, %v658
        %v676 = vmul.f32 %v612, %v658
        %v677 = vmul.f32 %v613, %v658
        %v678 = vmul.f32 %v614, %v658
        %v679 = vmul.f32 %v615, %v658
        %v680 = vmul.f32 %v616, %v658
        %v681 = vmul.f32 %v617, %v658
        %v682 = vmul.f32 %v618, %v658
        %v707 = vrot.slane %v659, 1
        %v708 = vrot.slane %v660, 1
        %v709 = vsel %vm369, %v707, %v708
        %v710 = vrot.slane %v661, 1
        %v711 = vsel %vm369, %v708, %v710
        %v712 = vrot.slane %v662, 1
        %v713 = vrot.slane %v663, 1
        %v714 = vsel %vm369, %v712, %v713
        %v715 = vrot.slane %v664, 1
        %v716 = vsel %vm369, %v713, %v715
        %v717 = vrot.slane %v665, 1
        %v718 = vrot.slane %v666, 1
        %v719 = vsel %vm369, %v717, %v718
        %v720 = vrot.slane %v667, 1
        %v721 = vsel %vm369, %v718, %v720
        %v722 = vrot.slane %v668, 1
        %v723 = vrot.slane %v669, 1
        %v724 = vsel %vm369, %v722, %v723
        %v725 = vrot.slane %v670, 1
        %v726 = vsel %vm369, %v723, %v725
        %v727 = vrot.slane %v671, 1
        %v728 = vrot.slane %v672, 1
        %v729 = vsel %vm369, %v727, %v728
        %v730 = vrot.slane %v673, 1
        %v731 = vsel %vm369, %v728, %v730
        %v732 = vrot.slane %v674, 1
        %v733 = vrot.slane %v675, 1
        %v734 = vsel %vm369, %v732, %v733
        %v735 = vrot.slane %v676, 1
        %v736 = vsel %vm369, %v733, %v735
        %v737 = vrot.slane %v677, 1
        %v738 = vrot.slane %v678, 1
        %v739 = vsel %vm369, %v737, %v738
        %v740 = vrot.slane %v679, 1
        %v741 = vsel %vm369, %v738, %v740
        %v742 = vrot.slane %v680, 1
        %v743 = vrot.slane %v681, 1
        %v744 = vsel %vm369, %v742, %v743
        %v745 = vrot.slane %v682, 1
        %v746 = vsel %vm369, %v743, %v745
        %v763 = vadd.f32 %v639, %v709
        %v764 = vadd.f32 %v640, %v711
        %v765 = vadd.f32 %v641, %v714
        %v766 = vadd.f32 %v642, %v716
        %v767 = vadd.f32 %v643, %v719
        %v768 = vadd.f32 %v644, %v721
        %v769 = vadd.f32 %v645, %v724
        %v770 = vadd.f32 %v646, %v726
        %v771 = vadd.f32 %v647, %v729
        %v772 = vadd.f32 %v648, %v731
        %v773 = vadd.f32 %v649, %v734
        %v774 = vadd.f32 %v650, %v736
        %v775 = vadd.f32 %v651, %v739
        %v776 = vadd.f32 %v652, %v741
        %v777 = vadd.f32 %v653, %v744
        %v778 = vadd.f32 %v654, %v746
        %v779 = vlaneseq
        %v780 = vshrl.u32 %v779, 7
        %v781 = vsub.s32 5, %v780
        %v782 = vrot.slane %v241, %v781
        %v783 = vmul.f32 %v595, %v782
        %v784 = vmul.f32 %v596, %v782
        %v785 = vmul.f32 %v597, %v782
        %v786 = vmul.f32 %v598, %v782
        %v787 = vmul.f32 %v599, %v782
        %v788 = vmul.f32 %v600, %v782
        %v789 = vmul.f32 %v601, %v782
        %v790 = vmul.f32 %v602, %v782
        %v791 = vmul.f32 %v603, %v782
        %v792 = vmul.f32 %v604, %v782
        %v793 = vmul.f32 %v605, %v782
        %v794 = vmul.f32 %v606, %v782
        %v795 = vmul.f32 %v607, %v782
        %v796 = vmul.f32 %v608, %v782
        %v797 = vmul.f32 %v609, %v782
        %v798 = vmul.f32 %v610, %v782
        %v799 = vmul.f32 %v611, %v782
        %v800 = vmul.f32 %v612, %v782
        %v801 = vmul.f32 %v613, %v782
        %v802 = vmul.f32 %v614, %v782
        %v803 = vmul.f32 %v615, %v782
        %v804 = vmul.f32 %v616, %v782
        %v805 = vmul.f32 %v617, %v782
        %v806 = vmul.f32 %v618, %v782
        %v831 = vrot.slane %v783, 2
        %v832 = vrot.slane %v784, 2
        %v833 = vsel %vm494, %v831, %v832
        %v834 = vrot.slane %v785, 2
        %v835 = vsel %vm494, %v832, %v834
        %v836 = vrot.slane %v786, 2
        %v837 = vrot.slane %v787, 2
        %v838 = vsel %vm494, %v836, %v837
        %v839 = vrot.slane %v788, 2
        %v840 = vsel %vm494, %v837, %v839
        %v841 = vrot.slane %v789, 2
        %v842 = vrot.slane %v790, 2
        %v843 = vsel %vm494, %v841, %v842
        %v844 = vrot.slane %v791, 2
        %v845 = vsel %vm494, %v842, %v844
        %v846 = vrot.slane %v792, 2
        %v847 = vrot.slane %v793, 2
        %v848 = vsel %vm494, %v846, %v847
        %v849 = vrot.slane %v794, 2
        %v850 = vsel %vm494, %v847, %v849
        %v851 = vrot.slane %v795, 2
        %v852 = vrot.slane %v796, 2
        %v853 = vsel %vm494, %v851, %v852
        %v854 = vrot.slane %v797, 2
        %v855 = vsel %vm494, %v852, %v854
        %v856 = vrot.slane %v798, 2
        %v857 = vrot.slane %v799, 2
        %v858 = vsel %vm494, %v856, %v857
        %v859 = vrot.slane %v800, 2
        %v860 = vsel %vm494, %v857, %v859
        %v861 = vrot.slane %v801, 2
        %v862 = vrot.slane %v802, 2
        %v863 = vsel %vm494, %v861, %v862
        %v864 = vrot.slane %v803, 2
        %v865 = vsel %vm494, %v862, %v864
        %v866 = vrot.slane %v804, 2
        %v867 = vrot.slane %v805, 2
        %v868 = vsel %vm494, %v866, %v867
        %v869 = vrot.slane %v806, 2
        %v870 = vsel %vm494, %v867, %v869
        %v887 = vadd.f32 %v763, %v833
        %v888 = vadd.f32 %v764, %v835
        %v889 = vadd.f32 %v765, %v838
        %v890 = vadd.f32 %v766, %v840
        %v891 = vadd.f32 %v767, %v843
        %v892 = vadd.f32 %v768, %v845
        %v893 = vadd.f32 %v769, %v848
        %v894 = vadd.f32 %v770, %v850
        %v895 = vadd.f32 %v771, %v853
        %v896 = vadd.f32 %v772, %v855
        %v897 = vadd.f32 %v773, %v858
        %v898 = vadd.f32 %v774, %v860
        %v899 = vadd.f32 %v775, %v863
        %v900 = vadd.f32 %v776, %v865
        %v901 = vadd.f32 %v777, %v868
        %v902 = vadd.f32 %v778, %v870
        %s903 = sadd.s32 %s238, 2
        %s904 = smul.u32 %s903, 3
        %s905 = smul.addr %s904, 4
        %s906 = scalar_lea.vmem %s236, %s905
        %v907 = vld [vmem:[%s906] sm:$0xf]
        %v908 = vld [vmem:[%s906 + $0x4] sm:$0xf]
        %v909 = vld [vmem:[%s906 + $0x8] sm:$0x1]
        %v910 = vld [vmem:[%s906 + $0xc] sm:$0xf]
        %v911 = vld [vmem:[%s906 + $0x10] sm:$0xf]
        %v912 = vld [vmem:[%s906 + $0x14] sm:$0x1]
        %v913 = vld [vmem:[%s906 + $0x18] sm:$0xf]
        %v914 = vld [vmem:[%s906 + $0x1c] sm:$0xf]
        %v915 = vld [vmem:[%s906 + $0x20] sm:$0x1]
        %v916 = vld [vmem:[%s906 + $0x24] sm:$0xf]
        %v917 = vld [vmem:[%s906 + $0x28] sm:$0xf]
        %v918 = vld [vmem:[%s906 + $0x2c] sm:$0x1]
        %v919 = vld [vmem:[%s906 + $0x30] sm:$0xf]
        %v920 = vld [vmem:[%s906 + $0x34] sm:$0xf]
        %v921 = vld [vmem:[%s906 + $0x38] sm:$0x1]
        %v922 = vld [vmem:[%s906 + $0x3c] sm:$0xf]
        %v923 = vld [vmem:[%s906 + $0x40] sm:$0xf]
        %v924 = vld [vmem:[%s906 + $0x44] sm:$0x1]
        %v925 = vld [vmem:[%s906 + $0x48] sm:$0xf]
        %v926 = vld [vmem:[%s906 + $0x4c] sm:$0xf]
        %v927 = vld [vmem:[%s906 + $0x50] sm:$0x1]
        %v928 = vld [vmem:[%s906 + $0x54] sm:$0xf]
        %v929 = vld [vmem:[%s906 + $0x58] sm:$0xf]
        %v930 = vld [vmem:[%s906 + $0x5c] sm:$0x1]
        %v931 = vunpack.c.l.bf16 %v907
        %v932 = vunpack.c.l.bf16 %v908
        %v933 = vunpack.c.l.bf16 %v909
        %v934 = vunpack.c.l.bf16 %v910
        %v935 = vunpack.c.l.bf16 %v911
        %v936 = vunpack.c.l.bf16 %v912
        %v937 = vunpack.c.l.bf16 %v913
        %v938 = vunpack.c.l.bf16 %v914
        %v939 = vunpack.c.l.bf16 %v915
        %v940 = vunpack.c.l.bf16 %v916
        %v941 = vunpack.c.l.bf16 %v917
        %v942 = vunpack.c.l.bf16 %v918
        %v943 = vunpack.c.l.bf16 %v919
        %v944 = vunpack.c.l.bf16 %v920
        %v945 = vunpack.c.l.bf16 %v921
        %v946 = vunpack.c.l.bf16 %v922
        %v947 = vunpack.c.l.bf16 %v923
        %v948 = vunpack.c.l.bf16 %v924
        %v949 = vunpack.c.l.bf16 %v925
        %v950 = vunpack.c.l.bf16 %v926
        %v951 = vunpack.c.l.bf16 %v927
        %v952 = vunpack.c.l.bf16 %v928
        %v953 = vunpack.c.l.bf16 %v929
        %v954 = vunpack.c.l.bf16 %v930
        %v955 = vlaneseq
        %v956 = vshrl.u32 %v955, 7
        %v957 = vsub.s32 6, %v956
        %v958 = vrot.slane %v241, %v957
        %v959 = vmul.f32 %v931, %v958
        %v960 = vmul.f32 %v932, %v958
        %v961 = vmul.f32 %v934, %v958
        %v962 = vmul.f32 %v935, %v958
        %v963 = vmul.f32 %v937, %v958
        %v964 = vmul.f32 %v938, %v958
        %v965 = vmul.f32 %v940, %v958
        %v966 = vmul.f32 %v941, %v958
        %v967 = vmul.f32 %v943, %v958
        %v968 = vmul.f32 %v944, %v958
        %v969 = vmul.f32 %v946, %v958
        %v970 = vmul.f32 %v947, %v958
        %v971 = vmul.f32 %v949, %v958
        %v972 = vmul.f32 %v950, %v958
        %v973 = vmul.f32 %v952, %v958
        %v974 = vmul.f32 %v953, %v958
        %v975 = vadd.f32 %v887, %v959
        %v976 = vadd.f32 %v888, %v960
        %v977 = vadd.f32 %v889, %v961
        %v978 = vadd.f32 %v890, %v962
        %v979 = vadd.f32 %v891, %v963
        %v980 = vadd.f32 %v892, %v964
        %v981 = vadd.f32 %v893, %v965
        %v982 = vadd.f32 %v894, %v966
        %v983 = vadd.f32 %v895, %v967
        %v984 = vadd.f32 %v896, %v968
        %v985 = vadd.f32 %v897, %v969
        %v986 = vadd.f32 %v898, %v970
        %v987 = vadd.f32 %v899, %v971
        %v988 = vadd.f32 %v900, %v972
        %v989 = vadd.f32 %v901, %v973
        %v990 = vadd.f32 %v902, %v974
        %v991 = vlaneseq
        %v992 = vshrl.u32 %v991, 7
        %v993 = vsub.s32 7, %v992
        %v994 = vrot.slane %v241, %v993
        %v995 = vmul.f32 %v931, %v994
        %v996 = vmul.f32 %v932, %v994
        %v997 = vmul.f32 %v933, %v994
        %v998 = vmul.f32 %v934, %v994
        %v999 = vmul.f32 %v935, %v994
        %v1000 = vmul.f32 %v936, %v994
        %v1001 = vmul.f32 %v937, %v994
        %v1002 = vmul.f32 %v938, %v994
        %v1003 = vmul.f32 %v939, %v994
        %v1004 = vmul.f32 %v940, %v994
        %v1005 = vmul.f32 %v941, %v994
        %v1006 = vmul.f32 %v942, %v994
        %v1007 = vmul.f32 %v943, %v994
        %v1008 = vmul.f32 %v944, %v994
        %v1009 = vmul.f32 %v945, %v994
        %v1010 = vmul.f32 %v946, %v994
        %v1011 = vmul.f32 %v947, %v994
        %v1012 = vmul.f32 %v948, %v994
        %v1013 = vmul.f32 %v949, %v994
        %v1014 = vmul.f32 %v950, %v994
        %v1015 = vmul.f32 %v951, %v994
        %v1016 = vmul.f32 %v952, %v994
        %v1017 = vmul.f32 %v953, %v994
        %v1018 = vmul.f32 %v954, %v994
        %v1043 = vrot.slane %v995, 1
        %v1044 = vrot.slane %v996, 1
        %v1045 = vsel %vm369, %v1043, %v1044
        %v1046 = vrot.slane %v997, 1
        %v1047 = vsel %vm369, %v1044, %v1046
        %v1048 = vrot.slane %v998, 1
        %v1049 = vrot.slane %v999, 1
        %v1050 = vsel %vm369, %v1048, %v1049
        %v1051 = vrot.slane %v1000, 1
        %v1052 = vsel %vm369, %v1049, %v1051
        %v1053 = vrot.slane %v1001, 1
        %v1054 = vrot.slane %v1002, 1
        %v1055 = vsel %vm369, %v1053, %v1054
        %v1056 = vrot.slane %v1003, 1
        %v1057 = vsel %vm369, %v1054, %v1056
        %v1058 = vrot.slane %v1004, 1
        %v1059 = vrot.slane %v1005, 1
        %v1060 = vsel %vm369, %v1058, %v1059
        %v1061 = vrot.slane %v1006, 1
        %v1062 = vsel %vm369, %v1059, %v1061
        %v1063 = vrot.slane %v1007, 1
        %v1064 = vrot.slane %v1008, 1
        %v1065 = vsel %vm369, %v1063, %v1064
        %v1066 = vrot.slane %v1009, 1
        %v1067 = vsel %vm369, %v1064, %v1066
        %v1068 = vrot.slane %v1010, 1
        %v1069 = vrot.slane %v1011, 1
        %v1070 = vsel %vm369, %v1068, %v1069
        %v1071 = vrot.slane %v1012, 1
        %v1072 = vsel %vm369, %v1069, %v1071
        %v1073 = vrot.slane %v1013, 1
        %v1074 = vrot.slane %v1014, 1
        %v1075 = vsel %vm369, %v1073, %v1074
        %v1076 = vrot.slane %v1015, 1
        %v1077 = vsel %vm369, %v1074, %v1076
        %v1078 = vrot.slane %v1016, 1
        %v1079 = vrot.slane %v1017, 1
        %v1080 = vsel %vm369, %v1078, %v1079
        %v1081 = vrot.slane %v1018, 1
        %v1082 = vsel %vm369, %v1079, %v1081
        %v1099 = vadd.f32 %v975, %v1045
        %v1100 = vadd.f32 %v976, %v1047
        %v1101 = vadd.f32 %v977, %v1050
        %v1102 = vadd.f32 %v978, %v1052
        %v1103 = vadd.f32 %v979, %v1055
        %v1104 = vadd.f32 %v980, %v1057
        %v1105 = vadd.f32 %v981, %v1060
        %v1106 = vadd.f32 %v982, %v1062
        %v1107 = vadd.f32 %v983, %v1065
        %v1108 = vadd.f32 %v984, %v1067
        %v1109 = vadd.f32 %v985, %v1070
        %v1110 = vadd.f32 %v986, %v1072
        %v1111 = vadd.f32 %v987, %v1075
        %v1112 = vadd.f32 %v988, %v1077
        %v1113 = vadd.f32 %v989, %v1080
        %v1114 = vadd.f32 %v990, %v1082
        %v1115 = vlaneseq
        %v1116 = vshrl.u32 %v1115, 7
        %v1117 = vsub.s32 0, %v1116
        %v1118 = vrot.slane %v242, %v1117
        %v1119 = vmul.f32 %v931, %v1118
        %v1120 = vmul.f32 %v932, %v1118
        %v1121 = vmul.f32 %v933, %v1118
        %v1122 = vmul.f32 %v934, %v1118
        %v1123 = vmul.f32 %v935, %v1118
        %v1124 = vmul.f32 %v936, %v1118
        %v1125 = vmul.f32 %v937, %v1118
        %v1126 = vmul.f32 %v938, %v1118
        %v1127 = vmul.f32 %v939, %v1118
        %v1128 = vmul.f32 %v940, %v1118
        %v1129 = vmul.f32 %v941, %v1118
        %v1130 = vmul.f32 %v942, %v1118
        %v1131 = vmul.f32 %v943, %v1118
        %v1132 = vmul.f32 %v944, %v1118
        %v1133 = vmul.f32 %v945, %v1118
        %v1134 = vmul.f32 %v946, %v1118
        %v1135 = vmul.f32 %v947, %v1118
        %v1136 = vmul.f32 %v948, %v1118
        %v1137 = vmul.f32 %v949, %v1118
        %v1138 = vmul.f32 %v950, %v1118
        %v1139 = vmul.f32 %v951, %v1118
        %v1140 = vmul.f32 %v952, %v1118
        %v1141 = vmul.f32 %v953, %v1118
        %v1142 = vmul.f32 %v954, %v1118
        %v1167 = vrot.slane %v1119, 2
        %v1168 = vrot.slane %v1120, 2
        %v1169 = vsel %vm494, %v1167, %v1168
        %v1170 = vrot.slane %v1121, 2
        %v1171 = vsel %vm494, %v1168, %v1170
        %v1172 = vrot.slane %v1122, 2
        %v1173 = vrot.slane %v1123, 2
        %v1174 = vsel %vm494, %v1172, %v1173
        %v1175 = vrot.slane %v1124, 2
        %v1176 = vsel %vm494, %v1173, %v1175
        %v1177 = vrot.slane %v1125, 2
        %v1178 = vrot.slane %v1126, 2
        %v1179 = vsel %vm494, %v1177, %v1178
        %v1180 = vrot.slane %v1127, 2
        %v1181 = vsel %vm494, %v1178, %v1180
        %v1182 = vrot.slane %v1128, 2
        %v1183 = vrot.slane %v1129, 2
        %v1184 = vsel %vm494, %v1182, %v1183
        %v1185 = vrot.slane %v1130, 2
        %v1186 = vsel %vm494, %v1183, %v1185
        %v1187 = vrot.slane %v1131, 2
        %v1188 = vrot.slane %v1132, 2
        %v1189 = vsel %vm494, %v1187, %v1188
        %v1190 = vrot.slane %v1133, 2
        %v1191 = vsel %vm494, %v1188, %v1190
        %v1192 = vrot.slane %v1134, 2
        %v1193 = vrot.slane %v1135, 2
        %v1194 = vsel %vm494, %v1192, %v1193
        %v1195 = vrot.slane %v1136, 2
        %v1196 = vsel %vm494, %v1193, %v1195
        %v1197 = vrot.slane %v1137, 2
        %v1198 = vrot.slane %v1138, 2
        %v1199 = vsel %vm494, %v1197, %v1198
        %v1200 = vrot.slane %v1139, 2
        %v1201 = vsel %vm494, %v1198, %v1200
        %v1202 = vrot.slane %v1140, 2
        %v1203 = vrot.slane %v1141, 2
        %v1204 = vsel %vm494, %v1202, %v1203
        %v1205 = vrot.slane %v1142, 2
        %v1206 = vsel %vm494, %v1203, %v1205
        %v1223 = vadd.f32 %v1099, %v1169
        %v1224 = vadd.f32 %v1100, %v1171
        %v1225 = vadd.f32 %v1101, %v1174
        %v1226 = vadd.f32 %v1102, %v1176
        %v1227 = vadd.f32 %v1103, %v1179
        %v1228 = vadd.f32 %v1104, %v1181
        %v1229 = vadd.f32 %v1105, %v1184
        %v1230 = vadd.f32 %v1106, %v1186
        %v1231 = vadd.f32 %v1107, %v1189
        %v1232 = vadd.f32 %v1108, %v1191
        %v1233 = vadd.f32 %v1109, %v1194
        %v1234 = vadd.f32 %v1110, %v1196
        %v1235 = vadd.f32 %v1111, %v1199
        %v1236 = vadd.f32 %v1112, %v1201
        %v1237 = vadd.f32 %v1113, %v1204
        %v1238 = vadd.f32 %v1114, %v1206
        %v1240 = vlaneseq
        %v1241 = vshrl.u32 %v1240, 7
        %v1242 = vsub.s32 0, %v1241
        %v1243 = vrot.slane %v243, %v1242
        %v1245 = vadd.f32 %v1223, %v1243
        %v1246 = vadd.f32 %v1224, %v1243
        %v1247 = vadd.f32 %v1225, %v1243
        %v1248 = vadd.f32 %v1226, %v1243
        %v1249 = vadd.f32 %v1227, %v1243
        %v1250 = vadd.f32 %v1228, %v1243
        %v1251 = vadd.f32 %v1229, %v1243
        %v1252 = vadd.f32 %v1230, %v1243
        %v1253 = vadd.f32 %v1231, %v1243
        %v1254 = vadd.f32 %v1232, %v1243
        %v1255 = vadd.f32 %v1233, %v1243
        %v1256 = vadd.f32 %v1234, %v1243
        %v1257 = vadd.f32 %v1235, %v1243
        %v1258 = vadd.f32 %v1236, %v1243
        %v1259 = vadd.f32 %v1237, %v1243
        %v1260 = vadd.f32 %v1238, %v1243
        %v1261 = vxor.u32 %v1245, 2147483648
        %v1262 = vxor.u32 %v1246, 2147483648
        %v1263 = vxor.u32 %v1247, 2147483648
        %v1264 = vxor.u32 %v1248, 2147483648
        %v1265 = vxor.u32 %v1249, 2147483648
        %v1266 = vxor.u32 %v1250, 2147483648
        %v1267 = vxor.u32 %v1251, 2147483648
        %v1268 = vxor.u32 %v1252, 2147483648
        %v1269 = vxor.u32 %v1253, 2147483648
        %v1270 = vxor.u32 %v1254, 2147483648
        %v1271 = vxor.u32 %v1255, 2147483648
        %v1272 = vxor.u32 %v1256, 2147483648
        %v1273 = vxor.u32 %v1257, 2147483648
        %v1274 = vxor.u32 %v1258, 2147483648
        %v1275 = vxor.u32 %v1259, 2147483648
        %v1276 = vxor.u32 %v1260, 2147483648
        %v1277 = vmul.f32 %v1261, 1.442695
        %v1278 = vpow.pop %v1277
        %v1279 = vmul.f32 %v1262, 1.442695
        %v1280 = vpow.pop %v1279
        %v1281 = vmul.f32 %v1263, 1.442695
        %v1282 = vpow.pop %v1281
        %v1283 = vmul.f32 %v1264, 1.442695
        %v1284 = vpow.pop %v1283
        %v1285 = vmul.f32 %v1265, 1.442695
        %v1286 = vpow.pop %v1285
        %v1287 = vmul.f32 %v1266, 1.442695
        %v1288 = vpow.pop %v1287
        %v1289 = vmul.f32 %v1267, 1.442695
        %v1290 = vpow.pop %v1289
        %v1291 = vmul.f32 %v1268, 1.442695
        %v1292 = vpow.pop %v1291
        %v1293 = vmul.f32 %v1269, 1.442695
        %v1294 = vpow.pop %v1293
        %v1295 = vmul.f32 %v1270, 1.442695
        %v1296 = vpow.pop %v1295
        %v1297 = vmul.f32 %v1271, 1.442695
        %v1298 = vpow.pop %v1297
        %v1299 = vmul.f32 %v1272, 1.442695
        %v1300 = vpow.pop %v1299
        %v1301 = vmul.f32 %v1273, 1.442695
        %v1302 = vpow.pop %v1301
        %v1303 = vmul.f32 %v1274, 1.442695
        %v1304 = vpow.pop %v1303
        %v1305 = vmul.f32 %v1275, 1.442695
        %v1306 = vpow.pop %v1305
        %v1307 = vmul.f32 %v1276, 1.442695
        %v1308 = vpow.pop %v1307
        %v1309 = vadd.f32 %v1278, 1.0
        %v1310 = vadd.f32 %v1280, 1.0
        %v1311 = vadd.f32 %v1282, 1.0
        %v1312 = vadd.f32 %v1284, 1.0
        %v1313 = vadd.f32 %v1286, 1.0
        %v1314 = vadd.f32 %v1288, 1.0
        %v1315 = vadd.f32 %v1290, 1.0
        %v1316 = vadd.f32 %v1292, 1.0
        %v1317 = vadd.f32 %v1294, 1.0
        %v1318 = vadd.f32 %v1296, 1.0
        %v1319 = vadd.f32 %v1298, 1.0
        %v1320 = vadd.f32 %v1300, 1.0
        %v1321 = vadd.f32 %v1302, 1.0
        %v1322 = vadd.f32 %v1304, 1.0
        %v1323 = vadd.f32 %v1306, 1.0
        %v1324 = vadd.f32 %v1308, 1.0
        %v1325 = vrcp.pop %v1309
        %v1326 = vmul.f32 1.0, %v1325
        %v1327 = vrcp.pop %v1310
        %v1328 = vmul.f32 1.0, %v1327
        %v1329 = vrcp.pop %v1311
        %v1330 = vmul.f32 1.0, %v1329
        %v1331 = vrcp.pop %v1312
        %v1332 = vmul.f32 1.0, %v1331
        %v1333 = vrcp.pop %v1313
        %v1334 = vmul.f32 1.0, %v1333
        %v1335 = vrcp.pop %v1314
        %v1336 = vmul.f32 1.0, %v1335
        %v1337 = vrcp.pop %v1315
        %v1338 = vmul.f32 1.0, %v1337
        %v1339 = vrcp.pop %v1316
        %v1340 = vmul.f32 1.0, %v1339
        %v1341 = vrcp.pop %v1317
        %v1342 = vmul.f32 1.0, %v1341
        %v1343 = vrcp.pop %v1318
        %v1344 = vmul.f32 1.0, %v1343
        %v1345 = vrcp.pop %v1319
        %v1346 = vmul.f32 1.0, %v1345
        %v1347 = vrcp.pop %v1320
        %v1348 = vmul.f32 1.0, %v1347
        %v1349 = vrcp.pop %v1321
        %v1350 = vmul.f32 1.0, %v1349
        %v1351 = vrcp.pop %v1322
        %v1352 = vmul.f32 1.0, %v1351
        %v1353 = vrcp.pop %v1323
        %v1354 = vmul.f32 1.0, %v1353
        %v1355 = vrcp.pop %v1324
        %v1356 = vmul.f32 1.0, %v1355
        %v1357 = vmul.f32 %v1245, %v1326
        %v1358 = vmul.f32 %v1246, %v1328
        %v1359 = vmul.f32 %v1247, %v1330
        %v1360 = vmul.f32 %v1248, %v1332
        %v1361 = vmul.f32 %v1249, %v1334
        %v1362 = vmul.f32 %v1250, %v1336
        %v1363 = vmul.f32 %v1251, %v1338
        %v1364 = vmul.f32 %v1252, %v1340
        %v1365 = vmul.f32 %v1253, %v1342
        %v1366 = vmul.f32 %v1254, %v1344
        %v1367 = vmul.f32 %v1255, %v1346
        %v1368 = vmul.f32 %v1256, %v1348
        %v1369 = vmul.f32 %v1257, %v1350
        %v1370 = vmul.f32 %v1258, %v1352
        %v1371 = vmul.f32 %v1259, %v1354
        %v1372 = vmul.f32 %v1260, %v1356
        %v1373 = vpack.c.bf16 %v1358, %v1357
        %v1374 = vpack.c.bf16 %v1360, %v1359
        %v1375 = vpack.c.bf16 %v1362, %v1361
        %v1376 = vpack.c.bf16 %v1364, %v1363
        %v1377 = vpack.c.bf16 %v1366, %v1365
        %v1378 = vpack.c.bf16 %v1368, %v1367
        %v1379 = vpack.c.bf16 %v1370, %v1369
        %v1380 = vpack.c.bf16 %v1372, %v1371
        %1382 = vset.pattern.permute.xlu0 0
        %1383 = vperm.xlu0 %1382, %v245
        %v1384 = vpop.permute.xlu0 %1383
        %vm1386 = vcmask 31744
        %v1388 = vsel %vm1386, %v244, 0
        %v1391 = vsel %vm1386, %v1373, 0
        %v1394 = vsel %vm1386, %v1374, 0
        %v1397 = vsel %vm1386, %v1375, 0
        %v1400 = vsel %vm1386, %v1376, 0
        %v1403 = vsel %vm1386, %v1377, 0
        %v1406 = vsel %vm1386, %v1378, 0
        %v1409 = vsel %vm1386, %v1379, 0
        %v1412 = vsel %vm1386, %v1380, 0
        %1414 = vmatprep.subr.bf16.mxu0 0
        %1415 = vmatpush1.bf16.xpose.msra.mxu0 %v1391
        %1416 = vmatprep.subr.bf16.mxu0 0
        %1417 = vmatpush1.bf16.xpose.msra.mxu0 %v1394
        %1418 = vmatprep.subr.bf16.mxu0 0
        %1419 = vmatpush1.bf16.xpose.msra.mxu0 %v1397
        %1420 = vmatprep.subr.bf16.mxu0 0
        %1421 = vmatpush1.bf16.xpose.msra.mxu0 %v1400
        %1422 = vmatprep.subr.bf16.mxu0 0
        %1423 = vmatpush1.bf16.xpose.msra.mxu0 %v1403
        %1424 = vmatprep.subr.bf16.mxu0 0
        %1425 = vmatpush1.bf16.xpose.msra.mxu0 %v1406
        %1426 = vmatprep.subr.bf16.mxu0 0
        %1427 = vmatpush1.bf16.xpose.msra.mxu0 %v1409
        %1428 = vmatprep.subr.bf16.mxu0 0
        %1429 = vmatpush1.bf16.xpose.msra.mxu0 %v1412
        %1430 = vmatprep.subr.bf16.mxu0 0
        %1431 = vmatpush1.bf16.xpose.msra.mxu0 0
        %1432 = vmatprep.subr.bf16.mxu0 0
        %1433 = vmatpush1.bf16.xpose.msra.mxu0 0
        %1434 = vmatprep.subr.bf16.mxu0 0
        %1435 = vmatpush1.bf16.xpose.msra.mxu0 0
        %1436 = vmatprep.subr.bf16.mxu0 0
        %1437 = vmatpush1.bf16.xpose.msra.mxu0 0
        %1438 = vmatprep.subr.bf16.mxu0 0
        %1439 = vmatpush1.bf16.xpose.msra.mxu0 0
        %1440 = vmatprep.subr.bf16.mxu0 0
        %1441 = vmatpush1.bf16.xpose.msra.mxu0 0
        %1442 = vmatprep.subr.bf16.mxu0 0
        %1443 = vmatpush1.bf16.xpose.msra.mxu0 0
        %1444 = vmatprep.subr.bf16.mxu0 0
        %1445 = vmatpush1.bf16.xpose.msra.mxu0 0
        %1446 = vmatprep.mubr.bf16.mxu0 0
        %1447 = vmatmul.mubr.bf16.gmra.mrb[0].mxu0 %v1388
        %v1448 = vpop.f32.mrb[0].mxu0
        %v1449 = vadd.f32 %v1384, %v1448
        %v1450 = vpop.f32.mrb[0].mxu0
        %v1451 = vpop.f32.mrb[0].mxu0
        %v1452 = vpop.f32.mrb[0].mxu0
        %1453 = vdwg.mxu0
        %v1454 = vxor.u32 %v1449, 2147483648
        %v1455 = vmul.f32 %v1454, 1.442695
        %v1456 = vpow.pop %v1455
        %v1457 = vadd.f32 %v1456, 1.0
        %v1458 = vrcp.pop %v1457
        %v1459 = vmul.f32 1.0, %v1458
        %v1460 = vmul.f32 %v1449, %v1459
        %1461 = vst [vmem:[%s231] sm:$0xff] %v1460
        %s1462 = sand.u32 %s151, 1
        %s1463 = scalar_lea.sflag [#allocation3], %s1462
        %s1464 = sand.u32 %s151, 1
        %s1465 = smul.addr %s1464, 8
        %s1466 = scalar_lea.vmem [#allocation2], %s1465
        // Predicated region
        $region41: #{tpu_custom_call.1} parent=39 // pred_check
          %p1467 = pneg %p161
        $region42: #{tpu_custom_call.1} parent=39 // pred_check_branch
          %1469 = sbr.rel (%p1467) target = $region44
        $region43: #{tpu_custom_call.1} parent=39 // pred_region
          %s1471 = ssub.s32 128, 128
          %1472 = vsyncadd %s1463, %s1471
          %s1473 = smul.addr %s23, 2
          %s1474 = sadd.s32 %s24, %s1473
          %s1475 = smul.addr %s1474, 128
          %s1476 = scalar_lea.hbm %s5, %s1475
          %s1478 = sshll.u32 %s1466, 4
          %s1479 = int_to_ptr.vmem [resolvable:$true] %s1478
          %1481 = dma.vmem_to_hbm [thread:$0]  %s1479, 128, %s1476, %s1463
        $region44: #{tpu_custom_call.1} parent=39 // pred_fallthru
          _
      $region40: #{tpu_custom_call.1} parent=5 // pred_fallthru
        _
      %p1482 = scmp.le.s32.totalorder 2, %s14
      // Predicated region
      $region45: #{tpu_custom_call.1} parent=5 // pred_check
        %p1483 = pneg %p1482
      $region46: #{tpu_custom_call.1} parent=5 // pred_check_branch
        %1485 = sbr.rel (%p1483) target = $region48
      $region47: #{tpu_custom_call.1} parent=5 // pred_region
        %s1486 = ssub.s32 %s14, 2
        // Predicated region
        $region49: #{tpu_custom_call.1} parent=47 // pred_check
          %p1487 = pneg %p167
        $region50: #{tpu_custom_call.1} parent=47 // pred_check_branch
          %1489 = sbr.rel (%p1487) target = $region52
        $region51: #{tpu_custom_call.1} parent=47 // pred_region
          %s1490 = sand.u32 %s152, 1
          %s1491 = scalar_lea.sflag [#allocation3], %s1490
          %s1492 = sand.u32 %s152, 1
          %s1493 = smul.addr %s1492, 8
          %s1494 = scalar_lea.vmem [#allocation2], %s1493
          %1495 = dma.done %s1491, 128
        $region52: #{tpu_custom_call.1} parent=47 // pred_fallthru
          _
      $region48: #{tpu_custom_call.1} parent=5 // pred_fallthru
        _
    $region6: #{tpu_custom_call.1} parent=1 // loop_footer
      %s18 = sadd.s32 1, %s14
    $region7: #{tpu_custom_call.1} parent=1 // loop_footer_branch
      %13 = sbr.rel target = $region3
    $region8: #{tpu_custom_call.1} parent=1 // loop_exit
      _
    %1496 = vsyncpa [#allocation3], 1
    %s1497 = scalar_lea.sflag [#allocation3], 1
    %1498 = vsyncpa %s1497, 1

</llo_original>
